<compile_context>
chip_gen: v5e
topology: v5e:2x2
jax: 0.10.0
libtpu: 0.0.40
codegen_flags: <defaults>
</compile_context>

<pallas_src>
import math
import functools

import jax
import jax.numpy as jnp
import numpy as np
from jax import lax
from jax.experimental import pallas as pl
from jax.experimental.pallas import tpu as pltpu

_INV_SQRT2 = 0.7071067811865476


# ----------------------------- kernel helpers ------------------------------

def _layernorm(x, g, b, eps=1e-6):
    # x: (..., D), g/b: (1, D) — biased variance, same as torch.nn.LayerNorm.
    mu = jnp.mean(x, axis=-1, keepdims=True)
    var = jnp.mean((x - mu) ** 2, axis=-1, keepdims=True)
    return (x - mu) * lax.rsqrt(var + eps) * g + b


def encoder_kernel(x_ref, ln1_g_ref, ln1_b_ref, wqkv_ref,
                   ln2_g_ref, ln2_b_ref, w1_ref, b1_ref, w2_ref, b2_ref,
                   fin_g_ref, fin_b_ref,
                   o_ref,
                   act_ref, qkv_ref, attn_ref,
                   *, num_heads):
    l = pl.program_id(1)
    num_l = pl.num_programs(1)

    # Load the batch element's activations only once (l == 0); afterwards the
    # activation is carried across the layer axis in VMEM scratch.
    @pl.when(l == 0)
    def _():
        act_ref[...] = x_ref[...]

    x = act_ref[...]                              # (N, D) f32
    n, d = x.shape
    dh = d // num_heads

    # ---- attention block: x + MHSA(LN1(x)) ----
    h = _layernorm(x, ln1_g_ref[...], ln1_b_ref[...])                 # f32
    qkv = jnp.dot(h.astype(jnp.bfloat16), wqkv_ref[...],
                  preferred_element_type=jnp.float32)                 # (N, 3D) f32
    # Downcast ONCE into a bf16 VMEM scratch (1/sqrt(dh) already folded into
    # the Q columns of wqkv at init, so no runtime scaling needed).
    qkv_ref[...] = qkv.astype(jnp.bfloat16)

    # Static head loop over static scratch slices (free ref views).
    # TODO(synk): for ViT-Base (12 heads, dh=64) use lax.fori_loop over
    #             paired-head 128-lane slabs to avoid unroll bloat and masked
    #             partial stores.
    for hh in range(num_heads):
        lo = hh * dh
        qh = qkv_ref[:, lo:lo + dh]                                   # bf16 (N, dh)
        kh = qkv_ref[:, d + lo:d + lo + dh]
        vh = qkv_ref[:, 2 * d + lo:2 * d + lo + dh]
        s = jnp.einsum("nd,md->nm", qh, kh,
                       preferred_element_type=jnp.float32)            # (N, N) f32
        p = jnp.exp(s - jnp.max(s, axis=-1, keepdims=True))
        inv_den = 1.0 / jnp.sum(p, axis=-1, keepdims=True)            # exact
        oh = jnp.dot(p.astype(jnp.bfloat16), vh,
                     preferred_element_type=jnp.float32)              # (N, dh) f32
        # Deferred softmax normalization: broadcast mul on the small tile.
        attn_ref[:, lo:lo + dh] = oh * inv_den

    x = x + attn_ref[...]

    # ---- MLP block: x + W2(GELU(W1(LN2(x)) + b1)) + b2 ----
    h = _layernorm(x, ln2_g_ref[...], ln2_b_ref[...])
    h = jnp.dot(h.astype(jnp.bfloat16), w1_ref[...],
                preferred_element_type=jnp.float32) + b1_ref[...]
    h = 0.5 * h * (1.0 + lax.erf(h * _INV_SQRT2))   # exact GELU (torch default)
    # TODO(synk): on v6e/v7x the GELU can run in bf16 to halve the (N, M)
    #             intermediate footprint; kept f32 for a tight reference check.
    h = jnp.dot(h.astype(jnp.bfloat16), w2_ref[...],
                preferred_element_type=jnp.float32) + b2_ref[...]
    x = x + h

    act_ref[...] = x                               # carry to layer l + 1

    @pl.when(l == num_l - 1)                       # fused final encoder LN
    def _():
        o_ref[...] = _layernorm(x, fin_g_ref[...], fin_b_ref[...]).astype(o_ref.dtype)


def layernorm_kernel(x_ref, g_ref, b_ref, o_ref):
    # only used for the degenerate num_layers == 0 case
    o_ref[...] = _layernorm(x_ref[...], g_ref[...], b_ref[...])


# ----------------------------- pallas wrappers ------------------------------

def _compiler_params(vmem_limit_bytes, dims):
    kwargs = dict(dimension_semantics=dims)
    if vmem_limit_bytes is not None:
        # ViT-Base on v6e: ~64-96 MiB; v7x (64 MiB physical): ~44-48 MiB.
        kwargs["vmem_limit_bytes"] = vmem_limit_bytes
    return pltpu.CompilerParams(**kwargs)


def final_layernorm(x, g, b, vmem_limit_bytes=None):
    B, N, D = x.shape
    return pl.pallas_call(
        layernorm_kernel,
        out_shape=jax.ShapeDtypeStruct((B, N, D), x.dtype),
        grid=(B,),
        in_specs=[
            pl.BlockSpec((None, N, D), lambda b: (b, 0, 0)),
            pl.BlockSpec((1, D), lambda b: (0, 0)),
            pl.BlockSpec((1, D), lambda b: (0, 0)),
        ],
        out_specs=pl.BlockSpec((None, N, D), lambda b: (b, 0, 0)),
        compiler_params=_compiler_params(vmem_limit_bytes, ("parallel",)),
    )(x, g, b)


def transformer_encoder(x, layer_params, final_g, final_b, num_heads,
                        vmem_limit_bytes=None):
    """Full encoder (all layers + final LN) in ONE fused pallas_call."""
    B, N, D = x.shape
    L = len(layer_params)
    if L == 0:
        return final_layernorm(x, final_g, final_b, vmem_limit_bytes)
    M = layer_params[0]["w1"].shape[1]

    # Stack per-layer params along a leading L axis so the grid's layer axis
    # indexes them (auto-pipeline prefetches layer l+1 while l computes).
    stacked = {k: jnp.stack([p[k] for p in layer_params], axis=0)
               for k in layer_params[0]}

    kernel = functools.partial(encoder_kernel, num_heads=num_heads)

    def lspec(shape):
        return pl.BlockSpec((None,) + shape, lambda b, l: (l, 0, 0))

    return pl.pallas_call(
        kernel,
        out_shape=jax.ShapeDtypeStruct((B, N, D), x.dtype),
        grid=(B, L),                                    # layer axis innermost
        in_specs=[
            pl.BlockSpec((None, N, D), lambda b, l: (b, 0, 0)),  # x (read at l==0)
            lspec((1, D)),          # ln1 gamma
            lspec((1, D)),          # ln1 beta
            lspec((D, 3 * D)),      # qkv weight (bf16, pre-T, q-scale folded)
            lspec((1, D)),          # ln2 gamma
            lspec((1, D)),          # ln2 beta
            lspec((D, M)),          # mlp W1 (bf16, pre-T)
            lspec((1, M)),          # mlp b1
            lspec((M, D)),          # mlp W2 (bf16, pre-T)
            lspec((1, D)),          # mlp b2
            pl.BlockSpec((1, D), lambda b, l: (0, 0)),           # final LN gamma
            pl.BlockSpec((1, D), lambda b, l: (0, 0)),           # final LN beta
        ],
        out_specs=pl.BlockSpec((None, N, D), lambda b, l: (b, 0, 0)),
        scratch_shapes=[
            pltpu.VMEM((N, D), jnp.float32),        # activation carry across layers
            pltpu.VMEM((N, 3 * D), jnp.bfloat16),   # one-shot bf16 qkv
            pltpu.VMEM((N, D), jnp.float32),        # per-head attn accumulation
        ],
        compiler_params=_compiler_params(vmem_limit_bytes,
                                         ("parallel", "arbitrary")),
    )(x, stacked["ln1_g"], stacked["ln1_b"], stacked["wqkv"],
      stacked["ln2_g"], stacked["ln2_b"], stacked["w1"], stacked["b1"],
      stacked["w2"], stacked["b2"], final_g, final_b)


# ----------------------------- parameter init -------------------------------

def _xavier_uniform(key, out_dim, in_dim):
    limit = math.sqrt(6.0 / (in_dim + out_dim))
    return jax.random.uniform(key, (out_dim, in_dim), jnp.float32, -limit, limit)


def init_params(key, num_layers, hidden_dim, mlp_dim, num_heads):
    dh = hidden_dim // num_heads
    inv_norm = 1.0 / math.sqrt(dh)    # == 1 / scalar_norm of the module
    layers = []
    for _ in range(num_layers):
        key, k_qkv, k_w1, k_b1, k_w2, k_b2 = jax.random.split(key, 6)
        wqkv = _xavier_uniform(k_qkv, 3 * hidden_dim, hidden_dim).T    # (D, 3D) f32
        # Fold 1/sqrt(dh) into the Q columns before the bf16 cast.
        wqkv = wqkv.at[:, :hidden_dim].multiply(inv_norm).astype(jnp.bfloat16)
        w1 = _xavier_uniform(k_w1, mlp_dim, hidden_dim).T.astype(jnp.bfloat16)
        b1 = (jax.random.normal(k_b1, (1, mlp_dim)) * 1e-6).astype(jnp.float32)
        w2 = _xavier_uniform(k_w2, hidden_dim, mlp_dim).T.astype(jnp.bfloat16)
        b2 = (jax.random.normal(k_b2, (1, hidden_dim)) * 1e-6).astype(jnp.float32)
        layers.append(dict(
            ln1_g=jnp.ones((1, hidden_dim), jnp.float32),
            ln1_b=jnp.zeros((1, hidden_dim), jnp.float32),
            wqkv=wqkv,
            ln2_g=jnp.ones((1, hidden_dim), jnp.float32),
            ln2_b=jnp.zeros((1, hidden_dim), jnp.float32),
            w1=w1, b1=b1, w2=w2, b2=b2,
        ))
    final_g = jnp.ones((1, hidden_dim), jnp.float32)
    final_b = jnp.zeros((1, hidden_dim), jnp.float32)
    return layers, final_g, final_b


# ----------------------------- pure-JAX reference ---------------------------
# Mirrors the kernel's precision policy and op order exactly (bf16 matmul
# operands with f32 accumulation, one-shot bf16 qkv downcast, deferred exact
# softmax normalization, f32 LN/GELU) so the check is tight.

def reference_encoder(x, layer_params, final_g, final_b, num_heads):
    B, N, D = x.shape
    H = num_heads
    dh = D // H
    bf16 = jnp.bfloat16
    for lp in layer_params:
        h = _layernorm(x, lp["ln1_g"], lp["ln1_b"])
        qkv = jnp.einsum("bnd,df->bnf", h.astype(bf16), lp["wqkv"],
                         preferred_element_type=jnp.float32)
        qkv = qkv.astype(bf16)                         # one-shot downcast
        q = qkv[..., :D].reshape(B, N, H, dh).transpose(0, 2, 1, 3)
        k = qkv[..., D:2 * D].reshape(B, N, H, dh).transpose(0, 2, 1, 3)
        v = qkv[..., 2 * D:].reshape(B, N, H, dh).transpose(0, 2, 1, 3)
        s = jnp.einsum("bhik,bhjk->bhij", q, k, preferred_element_type=jnp.float32)
        p = jnp.exp(s - jnp.max(s, axis=-1, keepdims=True))
        inv_den = 1.0 / jnp.sum(p, axis=-1, keepdims=True)
        o = jnp.einsum("bhij,bhjk->bhik", p.astype(bf16), v,
                       preferred_element_type=jnp.float32) * inv_den
        x = x + o.transpose(0, 2, 1, 3).reshape(B, N, D)

        h = _layernorm(x, lp["ln2_g"], lp["ln2_b"])
        h = jnp.einsum("bnd,dm->bnm", h.astype(bf16), lp["w1"],
                       preferred_element_type=jnp.float32) + lp["b1"]
        h = 0.5 * h * (1.0 + lax.erf(h * _INV_SQRT2))
        h = jnp.einsum("bnm,md->bnd", h.astype(bf16), lp["w2"],
                       preferred_element_type=jnp.float32) + lp["b2"]
        x = x + h
    return _layernorm(x, final_g, final_b)


# ----------------------------------- main ------------------------------------

if __name__ == "__main__":
    B, N, D = 2, 8, 32
    num_layers, num_heads, mlp_dim = 2, 4, 64

    key = jax.random.PRNGKey(0)
    key, kx, kp = jax.random.split(key, 3)
    x = jax.random.normal(kx, (B, N, D), jnp.float32)
    layer_params, final_g, final_b = init_params(kp, num_layers, D, mlp_dim,
                                                 num_heads)

    ref = jax.block_until_ready(
        reference_encoder(x, layer_params, final_g, final_b, num_heads))

    run = jax.jit(functools.partial(transformer_encoder, num_heads=num_heads))
    out = jax.block_until_ready(run(x, layer_params, final_g, final_b))

    np.testing.assert_allclose(np.asarray(out), np.asarray(ref),
                               atol=2e-3, rtol=2e-3)
    print("KERNEL_OK")
</pallas_src>

<mosaic_0001>
module attributes {stable_mosaic.version = 11 : i64} {
  func.func @encoder_kernel(%arg0: i32, %arg1: i32, %arg2: memref<1x8x32xf32, #tpu.memory_space<vmem>>, %arg3: memref<1x1x32xf32, #tpu.memory_space<vmem>>, %arg4: memref<1x1x32xf32, #tpu.memory_space<vmem>>, %arg5: memref<1x32x96xbf16, #tpu.memory_space<vmem>>, %arg6: memref<1x1x32xf32, #tpu.memory_space<vmem>>, %arg7: memref<1x1x32xf32, #tpu.memory_space<vmem>>, %arg8: memref<1x32x64xbf16, #tpu.memory_space<vmem>>, %arg9: memref<1x1x64xf32, #tpu.memory_space<vmem>>, %arg10: memref<1x64x32xbf16, #tpu.memory_space<vmem>>, %arg11: memref<1x1x32xf32, #tpu.memory_space<vmem>>, %arg12: memref<1x32xf32, #tpu.memory_space<vmem>>, %arg13: memref<1x32xf32, #tpu.memory_space<vmem>>, %arg14: memref<1x8x32xf32, #tpu.memory_space<vmem>>, %arg15: memref<8x32xf32, #tpu.memory_space<vmem>>, %arg16: memref<8x96xbf16, #tpu.memory_space<vmem>>, %arg17: memref<8x32xf32, #tpu.memory_space<vmem>>) attributes {dimension_semantics = [#tpu.dimension_semantics<parallel>, #tpu.dimension_semantics<arbitrary>], iteration_bounds = array<i64: 2, 2>, scalar_prefetch = 0 : i64, scratch_operands = 3 : i64, tpu.core_type = #tpu.core_type<tc>, window_params = [{transform_indices = @transform_0, window_bounds = array<i64: 1, 8, 32>}, {transform_indices = @transform_1, window_bounds = array<i64: 1, 1, 32>}, {transform_indices = @transform_2, window_bounds = array<i64: 1, 1, 32>}, {transform_indices = @transform_3, window_bounds = array<i64: 1, 32, 96>}, {transform_indices = @transform_4, window_bounds = array<i64: 1, 1, 32>}, {transform_indices = @transform_5, window_bounds = array<i64: 1, 1, 32>}, {transform_indices = @transform_6, window_bounds = array<i64: 1, 32, 64>}, {transform_indices = @transform_7, window_bounds = array<i64: 1, 1, 64>}, {transform_indices = @transform_8, window_bounds = array<i64: 1, 64, 32>}, {transform_indices = @transform_9, window_bounds = array<i64: 1, 1, 32>}, {pipeline_mode = #tpu.pipeline_mode<synchronous>, transform_indices = @transform_10, window_bounds = array<i64: 1, 32>}, {pipeline_mode = #tpu.pipeline_mode<synchronous>, transform_indices = @transform_11, window_bounds = array<i64: 1, 32>}, {transform_indices = @transform_12, window_bounds = array<i64: 1, 8, 32>}]} {
    %c0_i32 = arith.constant 0 : i32
    %0 = arith.cmpi eq, %arg1, %c0_i32 : i32
    %1 = arith.extui %0 : i1 to i32
    %c0_i32_0 = arith.constant 0 : i32
    %2 = arith.cmpi ne, %1, %c0_i32_0 : i32
    scf.if %2 {
      %c0_92 = arith.constant 0 : index
      %c0_93 = arith.constant 0 : index
      %c0_94 = arith.constant 0 : index
      %165 = vector.load %arg2[%c0_92, %c0_93, %c0_94] : memref<1x8x32xf32, #tpu.memory_space<vmem>>, vector<1x8x32xf32>
      %166 = vector.shape_cast %165 : vector<1x8x32xf32> to vector<8x32xf32>
      %c0_95 = arith.constant 0 : index
      %c0_96 = arith.constant 0 : index
      %167 = vector.load %arg15[%c0_95, %c0_96] : memref<8x32xf32, #tpu.memory_space<vmem>>, vector<8x32xf32>
      tpu.vector_store %arg15[%c0_95, %c0_96], %166 {strides = array<i32>} : memref<8x32xf32, #tpu.memory_space<vmem>>, vector<8x32xf32>,
    } else {
    }
    %c0 = arith.constant 0 : index
    %c0_1 = arith.constant 0 : index
    %3 = vector.load %arg15[%c0, %c0_1] : memref<8x32xf32, #tpu.memory_space<vmem>>, vector<8x32xf32>
    %c0_2 = arith.constant 0 : index
    %c0_3 = arith.constant 0 : index
    %c0_4 = arith.constant 0 : index
    %4 = vector.load %arg3[%c0_2, %c0_3, %c0_4] : memref<1x1x32xf32, #tpu.memory_space<vmem>>, vector<1x1x32xf32>
    %5 = vector.shape_cast %4 : vector<1x1x32xf32> to vector<1x32xf32>
    %c0_5 = arith.constant 0 : index
    %c0_6 = arith.constant 0 : index
    %c0_7 = arith.constant 0 : index
    %6 = vector.load %arg4[%c0_5, %c0_6, %c0_7] : memref<1x1x32xf32, #tpu.memory_space<vmem>>, vector<1x1x32xf32>
    %7 = vector.shape_cast %6 : vector<1x1x32xf32> to vector<1x32xf32>
    %cst = arith.constant dense<0.000000e+00> : vector<8xf32>
    %8 = vector.multi_reduction <add>, %3, %cst [1] : vector<8x32xf32> to vector<8xf32>
    %9 = vector.shape_cast %8 : vector<8xf32> to vector<8x1xf32>
    %cst_8 = arith.constant 3.200000e+01 : f32
    %10 = vector.broadcast %cst_8 : f32 to vector<8x1xf32>
    %11 = arith.divf %9, %10 : vector<8x1xf32>
    %12 = vector.broadcast %11 : vector<8x1xf32> to vector<8x32xf32>
    %13 = arith.subf %3, %12 : vector<8x32xf32>
    %14 = arith.mulf %13, %13 : vector<8x32xf32>
    %cst_9 = arith.constant dense<0.000000e+00> : vector<8xf32>
    %15 = vector.multi_reduction <add>, %14, %cst_9 [1] : vector<8x32xf32> to vector<8xf32>
    %16 = vector.shape_cast %15 : vector<8xf32> to vector<8x1xf32>
    %cst_10 = arith.constant 3.200000e+01 : f32
    %17 = vector.broadcast %cst_10 : f32 to vector<8x1xf32>
    %18 = arith.divf %16, %17 : vector<8x1xf32>
    %19 = vector.broadcast %11 : vector<8x1xf32> to vector<8x32xf32>
    %20 = arith.subf %3, %19 : vector<8x32xf32>
    %cst_11 = arith.constant 9.99999997E-7 : f32
    %21 = vector.broadcast %cst_11 : f32 to vector<8x1xf32>
    %22 = arith.addf %18, %21 : vector<8x1xf32>
    %23 = math.rsqrt %22 : vector<8x1xf32>
    %24 = vector.broadcast %23 : vector<8x1xf32> to vector<8x32xf32>
    %25 = arith.mulf %20, %24 : vector<8x32xf32>
    %26 = vector.broadcast %5 : vector<1x32xf32> to vector<8x32xf32>
    %27 = arith.mulf %25, %26 : vector<8x32xf32>
    %28 = vector.broadcast %7 : vector<1x32xf32> to vector<8x32xf32>
    %29 = arith.addf %27, %28 : vector<8x32xf32>
    %30 = arith.truncf %29 : vector<8x32xf32> to vector<8x32xbf16>
    %c0_12 = arith.constant 0 : index
    %c0_13 = arith.constant 0 : index
    %c0_14 = arith.constant 0 : index
    %31 = vector.load %arg5[%c0_12, %c0_13, %c0_14] : memref<1x32x96xbf16, #tpu.memory_space<vmem>>, vector<1x32x96xbf16>
    %32 = vector.shape_cast %31 : vector<1x32x96xbf16> to vector<32x96xbf16>
    %cst_15 = arith.constant dense<0.000000e+00> : vector<8x96xf32>
    %33 = tpu.matmul %30, %32, %cst_15 {dimension_numbers = #tpu.dot_dimension_numbers<[1], [0], [0], [1], [0, 0, 1, 1], [], []>} : vector<8x32xbf16>, vector<32x96xbf16>, vector<8x96xf32> -> vector<8x96xf32>
    %34 = arith.truncf %33 : vector<8x96xf32> to vector<8x96xbf16>
    %c0_16 = arith.constant 0 : index
    %c0_17 = arith.constant 0 : index
    %35 = vector.load %arg16[%c0_16, %c0_17] : memref<8x96xbf16, #tpu.memory_space<vmem>>, vector<8x96xbf16>
    tpu.vector_store %arg16[%c0_16, %c0_17], %34 {strides = array<i32>} : memref<8x96xbf16, #tpu.memory_space<vmem>>, vector<8x96xbf16>,
    %c0_18 = arith.constant 0 : index
    %c0_19 = arith.constant 0 : index
    %36 = vector.load %arg16[%c0_18, %c0_19] : memref<8x96xbf16, #tpu.memory_space<vmem>>, vector<8x8xbf16>
    %c0_20 = arith.constant 0 : index
    %c32 = arith.constant 32 : index
    %37 = vector.load %arg16[%c0_20, %c32] : memref<8x96xbf16, #tpu.memory_space<vmem>>, vector<8x8xbf16>
    %c0_21 = arith.constant 0 : index
    %c64 = arith.constant 64 : index
    %38 = vector.load %arg16[%c0_21, %c64] : memref<8x96xbf16, #tpu.memory_space<vmem>>, vector<8x8xbf16>
    "tpu.trace_start"() <{level = 10 : i32, message = "nd,md->nm"}> : () -> ()
    %cst_22 = arith.constant dense<0.000000e+00> : vector<8x8xf32>
    %39 = tpu.matmul %36, %37, %cst_22 {dimension_numbers = #tpu.dot_dimension_numbers<[1], [1], [0], [0], [0, 0, 1, 0], [], []>} : vector<8x8xbf16>, vector<8x8xbf16>, vector<8x8xf32> -> vector<8x8xf32>
    "tpu.trace_stop"() : () -> ()
    %cst_23 = arith.constant dense<0xFF800000> : vector<8xf32>
    %40 = vector.multi_reduction <maximumf>, %39, %cst_23 [1] : vector<8x8xf32> to vector<8xf32>
    %41 = vector.shape_cast %40 : vector<8xf32> to vector<8x1xf32>
    %42 = vector.broadcast %41 : vector<8x1xf32> to vector<8x8xf32>
    %43 = arith.subf %39, %42 : vector<8x8xf32>
    %44 = math.exp %43 : vector<8x8xf32>
    %cst_24 = arith.constant dense<0.000000e+00> : vector<8xf32>
    %45 = vector.multi_reduction <add>, %44, %cst_24 [1] : vector<8x8xf32> to vector<8xf32>
    %46 = vector.shape_cast %45 : vector<8xf32> to vector<8x1xf32>
    %cst_25 = arith.constant 1.000000e+00 : f32
    %47 = vector.broadcast %cst_25 : f32 to vector<8x1xf32>
    %48 = arith.divf %47, %46 : vector<8x1xf32>
    %49 = arith.truncf %44 : vector<8x8xf32> to vector<8x8xbf16>
    %cst_26 = arith.constant dense<0.000000e+00> : vector<8x8xf32>
    %50 = tpu.matmul %49, %38, %cst_26 {dimension_numbers = #tpu.dot_dimension_numbers<[1], [0], [0], [1], [0, 0, 1, 1], [], []>} : vector<8x8xbf16>, vector<8x8xbf16>, vector<8x8xf32> -> vector<8x8xf32>
    %51 = vector.broadcast %48 : vector<8x1xf32> to vector<8x8xf32>
    %52 = arith.mulf %50, %51 : vector<8x8xf32>
    %c0_27 = arith.constant 0 : index
    %c0_28 = arith.constant 0 : index
    %53 = vector.load %arg17[%c0_27, %c0_28] : memref<8x32xf32, #tpu.memory_space<vmem>>, vector<8x8xf32>
    tpu.vector_store %arg17[%c0_27, %c0_28], %52 {strides = array<i32>} : memref<8x32xf32, #tpu.memory_space<vmem>>, vector<8x8xf32>,
    %c0_29 = arith.constant 0 : index
    %c8 = arith.constant 8 : index
    %54 = vector.load %arg16[%c0_29, %c8] : memref<8x96xbf16, #tpu.memory_space<vmem>>, vector<8x8xbf16>
    %c0_30 = arith.constant 0 : index
    %c40 = arith.constant 40 : index
    %55 = vector.load %arg16[%c0_30, %c40] : memref<8x96xbf16, #tpu.memory_space<vmem>>, vector<8x8xbf16>
    %c0_31 = arith.constant 0 : index
    %c72 = arith.constant 72 : index
    %56 = vector.load %arg16[%c0_31, %c72] : memref<8x96xbf16, #tpu.memory_space<vmem>>, vector<8x8xbf16>
    "tpu.trace_start"() <{level = 10 : i32, message = "nd,md->nm"}> : () -> ()
    %cst_32 = arith.constant dense<0.000000e+00> : vector<8x8xf32>
    %57 = tpu.matmul %54, %55, %cst_32 {dimension_numbers = #tpu.dot_dimension_numbers<[1], [1], [0], [0], [0, 0, 1, 0], [], []>} : vector<8x8xbf16>, vector<8x8xbf16>, vector<8x8xf32> -> vector<8x8xf32>
    "tpu.trace_stop"() : () -> ()
    %cst_33 = arith.constant dense<0xFF800000> : vector<8xf32>
    %58 = vector.multi_reduction <maximumf>, %57, %cst_33 [1] : vector<8x8xf32> to vector<8xf32>
    %59 = vector.shape_cast %58 : vector<8xf32> to vector<8x1xf32>
    %60 = vector.broadcast %59 : vector<8x1xf32> to vector<8x8xf32>
    %61 = arith.subf %57, %60 : vector<8x8xf32>
    %62 = math.exp %61 : vector<8x8xf32>
    %cst_34 = arith.constant dense<0.000000e+00> : vector<8xf32>
    %63 = vector.multi_reduction <add>, %62, %cst_34 [1] : vector<8x8xf32> to vector<8xf32>
    %64 = vector.shape_cast %63 : vector<8xf32> to vector<8x1xf32>
    %cst_35 = arith.constant 1.000000e+00 : f32
    %65 = vector.broadcast %cst_35 : f32 to vector<8x1xf32>
    %66 = arith.divf %65, %64 : vector<8x1xf32>
    %67 = arith.truncf %62 : vector<8x8xf32> to vector<8x8xbf16>
    %cst_36 = arith.constant dense<0.000000e+00> : vector<8x8xf32>
    %68 = tpu.matmul %67, %56, %cst_36 {dimension_numbers = #tpu.dot_dimension_numbers<[1], [0], [0], [1], [0, 0, 1, 1], [], []>} : vector<8x8xbf16>, vector<8x8xbf16>, vector<8x8xf32> -> vector<8x8xf32>
    %69 = vector.broadcast %66 : vector<8x1xf32> to vector<8x8xf32>
    %70 = arith.mulf %68, %69 : vector<8x8xf32>
    %c0_37 = arith.constant 0 : index
    %c8_38 = arith.constant 8 : index
    %71 = vector.load %arg17[%c0_37, %c8_38] : memref<8x32xf32, #tpu.memory_space<vmem>>, vector<8x8xf32>
    tpu.vector_store %arg17[%c0_37, %c8_38], %70 {strides = array<i32>} : memref<8x32xf32, #tpu.memory_space<vmem>>, vector<8x8xf32>,
    %c0_39 = arith.constant 0 : index
    %c16 = arith.constant 16 : index
    %72 = vector.load %arg16[%c0_39, %c16] : memref<8x96xbf16, #tpu.memory_space<vmem>>, vector<8x8xbf16>
    %c0_40 = arith.constant 0 : index
    %c48 = arith.constant 48 : index
    %73 = vector.load %arg16[%c0_40, %c48] : memref<8x96xbf16, #tpu.memory_space<vmem>>, vector<8x8xbf16>
    %c0_41 = arith.constant 0 : index
    %c80 = arith.constant 80 : index
    %74 = vector.load %arg16[%c0_41, %c80] : memref<8x96xbf16, #tpu.memory_space<vmem>>, vector<8x8xbf16>
    "tpu.trace_start"() <{level = 10 : i32, message = "nd,md->nm"}> : () -> ()
    %cst_42 = arith.constant dense<0.000000e+00> : vector<8x8xf32>
    %75 = tpu.matmul %72, %73, %cst_42 {dimension_numbers = #tpu.dot_dimension_numbers<[1], [1], [0], [0], [0, 0, 1, 0], [], []>} : vector<8x8xbf16>, vector<8x8xbf16>, vector<8x8xf32> -> vector<8x8xf32>
    "tpu.trace_stop"() : () -> ()
    %cst_43 = arith.constant dense<0xFF800000> : vector<8xf32>
    %76 = vector.multi_reduction <maximumf>, %75, %cst_43 [1] : vector<8x8xf32> to vector<8xf32>
    %77 = vector.shape_cast %76 : vector<8xf32> to vector<8x1xf32>
    %78 = vector.broadcast %77 : vector<8x1xf32> to vector<8x8xf32>
    %79 = arith.subf %75, %78 : vector<8x8xf32>
    %80 = math.exp %79 : vector<8x8xf32>
    %cst_44 = arith.constant dense<0.000000e+00> : vector<8xf32>
    %81 = vector.multi_reduction <add>, %80, %cst_44 [1] : vector<8x8xf32> to vector<8xf32>
    %82 = vector.shape_cast %81 : vector<8xf32> to vector<8x1xf32>
    %cst_45 = arith.constant 1.000000e+00 : f32
    %83 = vector.broadcast %cst_45 : f32 to vector<8x1xf32>
    %84 = arith.divf %83, %82 : vector<8x1xf32>
    %85 = arith.truncf %80 : vector<8x8xf32> to vector<8x8xbf16>
    %cst_46 = arith.constant dense<0.000000e+00> : vector<8x8xf32>
    %86 = tpu.matmul %85, %74, %cst_46 {dimension_numbers = #tpu.dot_dimension_numbers<[1], [0], [0], [1], [0, 0, 1, 1], [], []>} : vector<8x8xbf16>, vector<8x8xbf16>, vector<8x8xf32> -> vector<8x8xf32>
    %87 = vector.broadcast %84 : vector<8x1xf32> to vector<8x8xf32>
    %88 = arith.mulf %86, %87 : vector<8x8xf32>
    %c0_47 = arith.constant 0 : index
    %c16_48 = arith.constant 16 : index
    %89 = vector.load %arg17[%c0_47, %c16_48] : memref<8x32xf32, #tpu.memory_space<vmem>>, vector<8x8xf32>
    tpu.vector_store %arg17[%c0_47, %c16_48], %88 {strides = array<i32>} : memref<8x32xf32, #tpu.memory_space<vmem>>, vector<8x8xf32>,
    %c0_49 = arith.constant 0 : index
    %c24 = arith.constant 24 : index
    %90 = vector.load %arg16[%c0_49, %c24] : memref<8x96xbf16, #tpu.memory_space<vmem>>, vector<8x8xbf16>
    %c0_50 = arith.constant 0 : index
    %c56 = arith.constant 56 : index
    %91 = vector.load %arg16[%c0_50, %c56] : memref<8x96xbf16, #tpu.memory_space<vmem>>, vector<8x8xbf16>
    %c0_51 = arith.constant 0 : index
    %c88 = arith.constant 88 : index
    %92 = vector.load %arg16[%c0_51, %c88] : memref<8x96xbf16, #tpu.memory_space<vmem>>, vector<8x8xbf16>
    "tpu.trace_start"() <{level = 10 : i32, message = "nd,md->nm"}> : () -> ()
    %cst_52 = arith.constant dense<0.000000e+00> : vector<8x8xf32>
    %93 = tpu.matmul %90, %91, %cst_52 {dimension_numbers = #tpu.dot_dimension_numbers<[1], [1], [0], [0], [0, 0, 1, 0], [], []>} : vector<8x8xbf16>, vector<8x8xbf16>, vector<8x8xf32> -> vector<8x8xf32>
    "tpu.trace_stop"() : () -> ()
    %cst_53 = arith.constant dense<0xFF800000> : vector<8xf32>
    %94 = vector.multi_reduction <maximumf>, %93, %cst_53 [1] : vector<8x8xf32> to vector<8xf32>
    %95 = vector.shape_cast %94 : vector<8xf32> to vector<8x1xf32>
    %96 = vector.broadcast %95 : vector<8x1xf32> to vector<8x8xf32>
    %97 = arith.subf %93, %96 : vector<8x8xf32>
    %98 = math.exp %97 : vector<8x8xf32>
    %cst_54 = arith.constant dense<0.000000e+00> : vector<8xf32>
    %99 = vector.multi_reduction <add>, %98, %cst_54 [1] : vector<8x8xf32> to vector<8xf32>
    %100 = vector.shape_cast %99 : vector<8xf32> to vector<8x1xf32>
    %cst_55 = arith.constant 1.000000e+00 : f32
    %101 = vector.broadcast %cst_55 : f32 to vector<8x1xf32>
    %102 = arith.divf %101, %100 : vector<8x1xf32>
    %103 = arith.truncf %98 : vector<8x8xf32> to vector<8x8xbf16>
    %cst_56 = arith.constant dense<0.000000e+00> : vector<8x8xf32>
    %104 = tpu.matmul %103, %92, %cst_56 {dimension_numbers = #tpu.dot_dimension_numbers<[1], [0], [0], [1], [0, 0, 1, 1], [], []>} : vector<8x8xbf16>, vector<8x8xbf16>, vector<8x8xf32> -> vector<8x8xf32>
    %105 = vector.broadcast %102 : vector<8x1xf32> to vector<8x8xf32>
    %106 = arith.mulf %104, %105 : vector<8x8xf32>
    %c0_57 = arith.constant 0 : index
    %c24_58 = arith.constant 24 : index
    %107 = vector.load %arg17[%c0_57, %c24_58] : memref<8x32xf32, #tpu.memory_space<vmem>>, vector<8x8xf32>
    tpu.vector_store %arg17[%c0_57, %c24_58], %106 {strides = array<i32>} : memref<8x32xf32, #tpu.memory_space<vmem>>, vector<8x8xf32>,
    %c0_59 = arith.constant 0 : index
    %c0_60 = arith.constant 0 : index
    %108 = vector.load %arg17[%c0_59, %c0_60] : memref<8x32xf32, #tpu.memory_space<vmem>>, vector<8x32xf32>
    %109 = arith.addf %3, %108 : vector<8x32xf32>
    %c0_61 = arith.constant 0 : index
    %c0_62 = arith.constant 0 : index
    %c0_63 = arith.constant 0 : index
    %110 = vector.load %arg6[%c0_61, %c0_62, %c0_63] : memref<1x1x32xf32, #tpu.memory_space<vmem>>, vector<1x1x32xf32>
    %111 = vector.shape_cast %110 : vector<1x1x32xf32> to vector<1x32xf32>
    %c0_64 = arith.constant 0 : index
    %c0_65 = arith.constant 0 : index
    %c0_66 = arith.constant 0 : index
    %112 = vector.load %arg7[%c0_64, %c0_65, %c0_66] : memref<1x1x32xf32, #tpu.memory_space<vmem>>, vector<1x1x32xf32>
    %113 = vector.shape_cast %112 : vector<1x1x32xf32> to vector<1x32xf32>
    %cst_67 = arith.constant dense<0.000000e+00> : vector<8xf32>
    %114 = vector.multi_reduction <add>, %109, %cst_67 [1] : vector<8x32xf32> to vector<8xf32>
    %115 = vector.shape_cast %114 : vector<8xf32> to vector<8x1xf32>
    %cst_68 = arith.constant 3.200000e+01 : f32
    %116 = vector.broadcast %cst_68 : f32 to vector<8x1xf32>
    %117 = arith.divf %115, %116 : vector<8x1xf32>
    %118 = vector.broadcast %117 : vector<8x1xf32> to vector<8x32xf32>
    %119 = arith.subf %109, %118 : vector<8x32xf32>
    %120 = arith.mulf %119, %119 : vector<8x32xf32>
    %cst_69 = arith.constant dense<0.000000e+00> : vector<8xf32>
    %121 = vector.multi_reduction <add>, %120, %cst_69 [1] : vector<8x32xf32> to vector<8xf32>
    %122 = vector.shape_cast %121 : vector<8xf32> to vector<8x1xf32>
    %cst_70 = arith.constant 3.200000e+01 : f32
    %123 = vector.broadcast %cst_70 : f32 to vector<8x1xf32>
    %124 = arith.divf %122, %123 : vector<8x1xf32>
    %125 = vector.broadcast %117 : vector<8x1xf32> to vector<8x32xf32>
    %126 = arith.subf %109, %125 : vector<8x32xf32>
    %cst_71 = arith.constant 9.99999997E-7 : f32
    %127 = vector.broadcast %cst_71 : f32 to vector<8x1xf32>
    %128 = arith.addf %124, %127 : vector<8x1xf32>
    %129 = math.rsqrt %128 : vector<8x1xf32>
    %130 = vector.broadcast %129 : vector<8x1xf32> to vector<8x32xf32>
    %131 = arith.mulf %126, %130 : vector<8x32xf32>
    %132 = vector.broadcast %111 : vector<1x32xf32> to vector<8x32xf32>
    %133 = arith.mulf %131, %132 : vector<8x32xf32>
    %134 = vector.broadcast %113 : vector<1x32xf32> to vector<8x32xf32>
    %135 = arith.addf %133, %134 : vector<8x32xf32>
    %136 = arith.truncf %135 : vector<8x32xf32> to vector<8x32xbf16>
    %c0_72 = arith.constant 0 : index
    %c0_73 = arith.constant 0 : index
    %c0_74 = arith.constant 0 : index
    %137 = vector.load %arg8[%c0_72, %c0_73, %c0_74] : memref<1x32x64xbf16, #tpu.memory_space<vmem>>, vector<1x32x64xbf16>
    %138 = vector.shape_cast %137 : vector<1x32x64xbf16> to vector<32x64xbf16>
    %cst_75 = arith.constant dense<0.000000e+00> : vector<8x64xf32>
    %139 = tpu.matmul %136, %138, %cst_75 {dimension_numbers = #tpu.dot_dimension_numbers<[1], [0], [0], [1], [0, 0, 1, 1], [], []>} : vector<8x32xbf16>, vector<32x64xbf16>, vector<8x64xf32> -> vector<8x64xf32>
    %c0_76 = arith.constant 0 : index
    %c0_77 = arith.constant 0 : index
    %c0_78 = arith.constant 0 : index
    %140 = vector.load %arg9[%c0_76, %c0_77, %c0_78] : memref<1x1x64xf32, #tpu.memory_space<vmem>>, vector<1x1x64xf32>
    %141 = vector.shape_cast %140 : vector<1x1x64xf32> to vector<1x64xf32>
    %142 = vector.broadcast %141 : vector<1x64xf32> to vector<8x64xf32>
    %143 = arith.addf %139, %142 : vector<8x64xf32>
    %cst_79 = arith.constant 5.000000e-01 : f32
    %144 = vector.broadcast %cst_79 : f32 to vector<8x64xf32>
    %145 = arith.mulf %144, %143 : vector<8x64xf32>
    %cst_80 = arith.constant 0.707106769 : f32
    %146 = vector.broadcast %cst_80 : f32 to vector<8x64xf32>
    %147 = arith.mulf %143, %146 : vector<8x64xf32>
    %148 = math.erf %147 : vector<8x64xf32>
    %cst_81 = arith.constant 1.000000e+00 : f32
    %149 = vector.broadcast %cst_81 : f32 to vector<8x64xf32>
    %150 = arith.addf %149, %148 : vector<8x64xf32>
    %151 = arith.mulf %145, %150 : vector<8x64xf32>
    %152 = arith.truncf %151 : vector<8x64xf32> to vector<8x64xbf16>
    %c0_82 = arith.constant 0 : index
    %c0_83 = arith.constant 0 : index
    %c0_84 = arith.constant 0 : index
    %153 = vector.load %arg10[%c0_82, %c0_83, %c0_84] : memref<1x64x32xbf16, #tpu.memory_space<vmem>>, vector<1x64x32xbf16>
    %154 = vector.shape_cast %153 : vector<1x64x32xbf16> to vector<64x32xbf16>
    %cst_85 = arith.constant dense<0.000000e+00> : vector<8x32xf32>
    %155 = tpu.matmul %152, %154, %cst_85 {dimension_numbers = #tpu.dot_dimension_numbers<[1], [0], [0], [1], [0, 0, 1, 1], [], []>} : vector<8x64xbf16>, vector<64x32xbf16>, vector<8x32xf32> -> vector<8x32xf32>
    %c0_86 = arith.constant 0 : index
    %c0_87 = arith.constant 0 : index
    %c0_88 = arith.constant 0 : index
    %156 = vector.load %arg11[%c0_86, %c0_87, %c0_88] : memref<1x1x32xf32, #tpu.memory_space<vmem>>, vector<1x1x32xf32>
    %157 = vector.shape_cast %156 : vector<1x1x32xf32> to vector<1x32xf32>
    %158 = vector.broadcast %157 : vector<1x32xf32> to vector<8x32xf32>
    %159 = arith.addf %155, %158 : vector<8x32xf32>
    %160 = arith.addf %109, %159 : vector<8x32xf32>
    %c0_89 = arith.constant 0 : index
    %c0_90 = arith.constant 0 : index
    %161 = vector.load %arg15[%c0_89, %c0_90] : memref<8x32xf32, #tpu.memory_space<vmem>>, vector<8x32xf32>
    tpu.vector_store %arg15[%c0_89, %c0_90], %160 {strides = array<i32>} : memref<8x32xf32, #tpu.memory_space<vmem>>, vector<8x32xf32>,
    %c1_i32 = arith.constant 1 : i32
    %162 = arith.cmpi eq, %arg1, %c1_i32 : i32
    %163 = arith.extui %162 : i1 to i32
    %c0_i32_91 = arith.constant 0 : i32
    %164 = arith.cmpi ne, %163, %c0_i32_91 : i32
    scf.if %164 {
      %c0_92 = arith.constant 0 : index
      %c0_93 = arith.constant 0 : index
      %165 = vector.load %arg12[%c0_92, %c0_93] : memref<1x32xf32, #tpu.memory_space<vmem>>, vector<1x32xf32>
      %c0_94 = arith.constant 0 : index
      %c0_95 = arith.constant 0 : index
      %166 = vector.load %arg13[%c0_94, %c0_95] : memref<1x32xf32, #tpu.memory_space<vmem>>, vector<1x32xf32>
      %cst_96 = arith.constant dense<0.000000e+00> : vector<8xf32>
      %167 = vector.multi_reduction <add>, %160, %cst_96 [1] : vector<8x32xf32> to vector<8xf32>
      %168 = vector.shape_cast %167 : vector<8xf32> to vector<8x1xf32>
      %cst_97 = arith.constant 3.200000e+01 : f32
      %169 = vector.broadcast %cst_97 : f32 to vector<8x1xf32>
      %170 = arith.divf %168, %169 : vector<8x1xf32>
      %171 = vector.broadcast %170 : vector<8x1xf32> to vector<8x32xf32>
      %172 = arith.subf %160, %171 : vector<8x32xf32>
      %173 = arith.mulf %172, %172 : vector<8x32xf32>
      %cst_98 = arith.constant dense<0.000000e+00> : vector<8xf32>
      %174 = vector.multi_reduction <add>, %173, %cst_98 [1] : vector<8x32xf32> to vector<8xf32>
      %175 = vector.shape_cast %174 : vector<8xf32> to vector<8x1xf32>
      %cst_99 = arith.constant 3.200000e+01 : f32
      %176 = vector.broadcast %cst_99 : f32 to vector<8x1xf32>
      %177 = arith.divf %175, %176 : vector<8x1xf32>
      %178 = vector.broadcast %170 : vector<8x1xf32> to vector<8x32xf32>
      %179 = arith.subf %160, %178 : vector<8x32xf32>
      %cst_100 = arith.constant 9.99999997E-7 : f32
      %180 = vector.broadcast %cst_100 : f32 to vector<8x1xf32>
      %181 = arith.addf %177, %180 : vector<8x1xf32>
      %182 = math.rsqrt %181 : vector<8x1xf32>
      %183 = vector.broadcast %182 : vector<8x1xf32> to vector<8x32xf32>
      %184 = arith.mulf %179, %183 : vector<8x32xf32>
      %185 = vector.broadcast %165 : vector<1x32xf32> to vector<8x32xf32>
      %186 = arith.mulf %184, %185 : vector<8x32xf32>
      %187 = vector.broadcast %166 : vector<1x32xf32> to vector<8x32xf32>
      %188 = arith.addf %186, %187 : vector<8x32xf32>
      %c0_101 = arith.constant 0 : index
      %c0_102 = arith.constant 0 : index
      %c0_103 = arith.constant 0 : index
      %189 = vector.load %arg14[%c0_101, %c0_102, %c0_103] : memref<1x8x32xf32, #tpu.memory_space<vmem>>, vector<1x8x32xf32>
      %190 = vector.shape_cast %189 : vector<1x8x32xf32> to vector<8x32xf32>
      %191 = vector.shape_cast %188 : vector<8x32xf32> to vector<1x8x32xf32>
      tpu.vector_store %arg14[%c0_101, %c0_102, %c0_103], %191 {strides = array<i32>} : memref<1x8x32xf32, #tpu.memory_space<vmem>>, vector<1x8x32xf32>,
    } else {
    }
    return
  }
  func.func @transform_0(%arg0: i32, %arg1: i32) -> (i32, i32, i32) {
    %c0_i32 = arith.constant 0 : i32
    %c0_i32_0 = arith.constant 0 : i32
    %c0_i32_1 = arith.constant 0 : i32
    return %arg0, %c0_i32, %c0_i32_0 : i32, i32, i32
  }
  func.func @transform_1(%arg0: i32, %arg1: i32) -> (i32, i32, i32) {
    %c0_i32 = arith.constant 0 : i32
    %c0_i32_0 = arith.constant 0 : i32
    %c0_i32_1 = arith.constant 0 : i32
    return %arg1, %c0_i32, %c0_i32_0 : i32, i32, i32
  }
  func.func @transform_2(%arg0: i32, %arg1: i32) -> (i32, i32, i32) {
    %c0_i32 = arith.constant 0 : i32
    %c0_i32_0 = arith.constant 0 : i32
    %c0_i32_1 = arith.constant 0 : i32
    return %arg1, %c0_i32, %c0_i32_0 : i32, i32, i32
  }
  func.func @transform_3(%arg0: i32, %arg1: i32) -> (i32, i32, i32) {
    %c0_i32 = arith.constant 0 : i32
    %c0_i32_0 = arith.constant 0 : i32
    %c0_i32_1 = arith.constant 0 : i32
    return %arg1, %c0_i32, %c0_i32_0 : i32, i32, i32
  }
  func.func @transform_4(%arg0: i32, %arg1: i32) -> (i32, i32, i32) {
    %c0_i32 = arith.constant 0 : i32
    %c0_i32_0 = arith.constant 0 : i32
    %c0_i32_1 = arith.constant 0 : i32
    return %arg1, %c0_i32, %c0_i32_0 : i32, i32, i32
  }
  func.func @transform_5(%arg0: i32, %arg1: i32) -> (i32, i32, i32) {
    %c0_i32 = arith.constant 0 : i32
    %c0_i32_0 = arith.constant 0 : i32
    %c0_i32_1 = arith.constant 0 : i32
    return %arg1, %c0_i32, %c0_i32_0 : i32, i32, i32
  }
  func.func @transform_6(%arg0: i32, %arg1: i32) -> (i32, i32, i32) {
    %c0_i32 = arith.constant 0 : i32
    %c0_i32_0 = arith.constant 0 : i32
    %c0_i32_1 = arith.constant 0 : i32
    return %arg1, %c0_i32, %c0_i32_0 : i32, i32, i32
  }
  func.func @transform_7(%arg0: i32, %arg1: i32) -> (i32, i32, i32) {
    %c0_i32 = arith.constant 0 : i32
    %c0_i32_0 = arith.constant 0 : i32
    %c0_i32_1 = arith.constant 0 : i32
    return %arg1, %c0_i32, %c0_i32_0 : i32, i32, i32
  }
  func.func @transform_8(%arg0: i32, %arg1: i32) -> (i32, i32, i32) {
    %c0_i32 = arith.constant 0 : i32
    %c0_i32_0 = arith.constant 0 : i32
    %c0_i32_1 = arith.constant 0 : i32
    return %arg1, %c0_i32, %c0_i32_0 : i32, i32, i32
  }
  func.func @transform_9(%arg0: i32, %arg1: i32) -> (i32, i32, i32) {
    %c0_i32 = arith.constant 0 : i32
    %c0_i32_0 = arith.constant 0 : i32
    %c0_i32_1 = arith.constant 0 : i32
    return %arg1, %c0_i32, %c0_i32_0 : i32, i32, i32
  }
  func.func @transform_10(%arg0: i32, %arg1: i32) -> (i32, i32) {
    %c0_i32 = arith.constant 0 : i32
    %c0_i32_0 = arith.constant 0 : i32
    %c0_i32_1 = arith.constant 0 : i32
    return %c0_i32, %c0_i32_0 : i32, i32
  }
  func.func @transform_11(%arg0: i32, %arg1: i32) -> (i32, i32) {
    %c0_i32 = arith.constant 0 : i32
    %c0_i32_0 = arith.constant 0 : i32
    %c0_i32_1 = arith.constant 0 : i32
    return %c0_i32, %c0_i32_0 : i32, i32
  }
  func.func @transform_12(%arg0: i32, %arg1: i32) -> (i32, i32, i32) {
    %c0_i32 = arith.constant 0 : i32
    %c0_i32_0 = arith.constant 0 : i32
    %c0_i32_1 = arith.constant 0 : i32
    return %arg0, %c0_i32, %c0_i32_0 : i32, i32, i32
  }
}

</mosaic_0001>

<llo_original>
// kernel: transformer_encoder.1
$region0: #{transformer_encoder.1}
  #allocation0 [shape = 'u32[]', space=smem, size = 0x4, offset = 0x4, fixed_abs, tag = 'smem constant byte address 0x4 - core index']
  #allocation1 [shape = 'u32[72,128]{1,0:T(1,128)}', space=vmem, size = 0x9000, scoped, tag = 'internal scratch']
  #allocation2 [shape = 'f32[8,32]{1,0:T(8,128)}', space=vmem, size = 0x1000, scoped, tag = 'scratch operand']
  #allocation3 [shape = 'bf16[8,96]{1,0:T(8,128)(2,1)}', space=vmem, size = 0x800, scoped, tag = 'scratch operand']
  #allocation4 [shape = 'f32[8,32]{1,0:T(8,128)}', space=vmem, size = 0x1000, scoped, tag = 'scratch operand']
  %s0 = inlined_call_operand.vmem [shape: f32[2,8,32], index: 0, kind: input, shape index: {}]
  %s1 = inlined_call_operand.vmem [shape: f32[2,1,32], index: 1, kind: input, shape index: {}]
  %s2 = inlined_call_operand.vmem [shape: f32[2,1,32], index: 2, kind: input, shape index: {}]
  %s3 = inlined_call_operand.vmem [shape: bf16[2,32,96], index: 3, kind: input, shape index: {}]
  %s4 = inlined_call_operand.vmem [shape: f32[2,1,32], index: 4, kind: input, shape index: {}]
  %s5 = inlined_call_operand.vmem [shape: f32[2,1,32], index: 5, kind: input, shape index: {}]
  %s6 = inlined_call_operand.vmem [shape: bf16[2,32,64], index: 6, kind: input, shape index: {}]
  %s7 = inlined_call_operand.vmem [shape: f32[2,1,64], index: 7, kind: input, shape index: {}]
  %s8 = inlined_call_operand.vmem [shape: bf16[2,64,32], index: 8, kind: input, shape index: {}]
  %s9 = inlined_call_operand.vmem [shape: f32[2,1,32], index: 9, kind: input, shape index: {}]
  %s10 = inlined_call_operand.vmem [shape: f32[1,32], index: 10, kind: input, shape index: {}]
  %s11 = inlined_call_operand.vmem [shape: f32[1,32], index: 11, kind: input, shape index: {}]
  %s12 = inlined_call_operand.hbm [shape: f32[2,8,32], index: 12, kind: output, shape index: {}]
  %s13 = sld [smem:[#allocation0]]
  $region89: #{transformer_encoder.1} parent=0
    _
  %s15 = ssub.s32 1, %s13
  %s16 = scalar_select 0, %s15, %s13
  $region1: #{transformer_encoder.1} parent=0
    #allocation5 [shape = 'u8[8192]{0}', space=vmem, size = 0x2000, scoped, tag = 'output window, operand 0']
    #allocation6 [shape = 's32[2]{0}', space=sflag, size = 0x8, scoped, tag = 'scoped memory for transformer_encoder.1']
    %17 = vsyncpa [#allocation6], 0
    %s18 = scalar_lea.sflag [#allocation6], 1
    %19 = vsyncpa %s18, 0
    loop: start=0, step=1, limit=6
    $region2: #{transformer_encoder.1} parent=1 // loop_pre_header
      _
    $region3: #{transformer_encoder.1} parent=1 // loop_header
      %s21 = sphi 0, %s25
      %p22 = scmp.ge.s32.totalorder %s21, 6
      %s28 = sphi 0, %s40
      %s29 = sphi 0, %s36
      %s30 = sphi 0, %s28
      %s31 = sphi 0, %s29
      %s32 = sphi 0, %s30
      %s33 = sphi 0, %s31
      %s43 = sphi 0, %s45
      %s46 = sphi 0, %s43
      %s47 = sphi 0, %s46
      %s63 = sphi 0, %s47
      %s69 = sphi 0, %s71
      %s72 = sphi 0, %s69
      %s73 = sphi 0, %s72
      %s89 = sphi 0, %s73
      %s95 = sphi 0, %s97
      %s98 = sphi 0, %s95
      %s99 = sphi 0, %s98
      %s115 = sphi 0, %s99
      %s121 = sphi 0, %s123
      %s124 = sphi 0, %s121
      %s125 = sphi 0, %s124
      %s141 = sphi 0, %s125
      %s147 = sphi 0, %s149
      %s150 = sphi 0, %s147
      %s151 = sphi 0, %s150
      %s167 = sphi 0, %s151
      %s173 = sphi 0, %s175
      %s176 = sphi 0, %s173
      %s177 = sphi 0, %s176
      %s193 = sphi 0, %s177
      %s199 = sphi 0, %s201
      %s202 = sphi 0, %s199
      %s203 = sphi 0, %s202
      %s219 = sphi 0, %s203
      %s225 = sphi 0, %s227
      %s228 = sphi 0, %s225
      %s229 = sphi 0, %s228
      %s245 = sphi 0, %s229
      %s251 = sphi 0, %s253
      %s254 = sphi 0, %s251
      %s255 = sphi 0, %s254
      %s271 = sphi 0, %s255
      %s277 = sphi 0, %s279
      %s280 = sphi 0, %s277
      %s281 = sphi 0, %s280
      %s297 = sphi 0, %s281
      %s301 = sphi 0, %s301
      %s303 = sphi 0, %s301
      %s304 = sphi 0, %s303
      %s318 = sphi 0, %s304
      %s322 = sphi 0, %s322
      %s324 = sphi 0, %s322
      %s325 = sphi 0, %s324
      %s339 = sphi 0, %s325
      %s345 = sphi 0, %s347
      %s348 = sphi 0, %s345
      %s349 = sphi 0, %s348
      %s365 = sphi 0, %s349
    $region4: #{transformer_encoder.1} parent=1 // loop_header_branch
      %24 = sbr.rel (%p22) target = $region8
    $region5: #{transformer_encoder.1} parent=1 // loop_body
      %s26 = ssub.s32 %s21, 1
      %s27 = ssub.s32 %s21, 2
      %s34 = sadd.s32 1, %s29
      %p35 = scmp.ge.s32.totalorder %s34, 2
      %s36 = scalar_select %p35, 0, %s34
      %s37 = sadd.s32 1, %s28
      %s38 = scalar_select %p35, %s37, %s28
      %p39 = scmp.ge.s32.totalorder %s38, 2
      %s40 = scalar_select %p39, 0, %s38
      %s41 = ssub.s32 %s28, %s40
      %p42 = scmp.eq.s32.totalorder %s41, 0
      %s44 = sadd.s32 %s43, 1
      %s45 = scalar_select %p42, %s43, %s44
      %p48 = pneg %p42
      %p49 = scmp.eq.s32.totalorder %s21, 3
      %p50 = por %p48, %p49
      %p51 = scmp.ne.s32.totalorder %s43, %s46
      %p52 = scmp.eq.s32.totalorder %s21, 0
      %p53 = por %p51, %p52
      %p54 = scmp.ne.s32.totalorder %s43, %s46
      %p55 = scmp.eq.s32.totalorder %s26, 3
      %p56 = por %p54, %p55
      %p57 = scmp.ne.s32.totalorder %s46, %s47
      %p58 = scmp.eq.s32.totalorder %s26, 0
      %p59 = por %p57, %p58
      %p60 = scmp.ne.s32.totalorder %s46, %s47
      %p61 = scmp.eq.s32.totalorder %s27, 3
      %p62 = por %p60, %p61
      %p64 = scmp.ne.s32.totalorder %s47, %s63
      %p65 = scmp.eq.s32.totalorder %s27, 0
      %p66 = por %p64, %p65
      %s67 = ssub.s32 %s29, %s36
      %p68 = scmp.eq.s32.totalorder %s67, 0
      %s70 = sadd.s32 %s69, 1
      %s71 = scalar_select %p68, %s69, %s70
      %p74 = pneg %p68
      %p75 = scmp.eq.s32.totalorder %s21, 3
      %p76 = por %p74, %p75
      %p77 = scmp.ne.s32.totalorder %s69, %s72
      %p78 = scmp.eq.s32.totalorder %s21, 0
      %p79 = por %p77, %p78
      %p80 = scmp.ne.s32.totalorder %s69, %s72
      %p81 = scmp.eq.s32.totalorder %s26, 3
      %p82 = por %p80, %p81
      %p83 = scmp.ne.s32.totalorder %s72, %s73
      %p84 = scmp.eq.s32.totalorder %s26, 0
      %p85 = por %p83, %p84
      %p86 = scmp.ne.s32.totalorder %s72, %s73
      %p87 = scmp.eq.s32.totalorder %s27, 3
      %p88 = por %p86, %p87
      %p90 = scmp.ne.s32.totalorder %s73, %s89
      %p91 = scmp.eq.s32.totalorder %s27, 0
      %p92 = por %p90, %p91
      %s93 = ssub.s32 %s29, %s36
      %p94 = scmp.eq.s32.totalorder %s93, 0
      %s96 = sadd.s32 %s95, 1
      %s97 = scalar_select %p94, %s95, %s96
      %p100 = pneg %p94
      %p101 = scmp.eq.s32.totalorder %s21, 3
      %p102 = por %p100, %p101
      %p103 = scmp.ne.s32.totalorder %s95, %s98
      %p104 = scmp.eq.s32.totalorder %s21, 0
      %p105 = por %p103, %p104
      %p106 = scmp.ne.s32.totalorder %s95, %s98
      %p107 = scmp.eq.s32.totalorder %s26, 3
      %p108 = por %p106, %p107
      %p109 = scmp.ne.s32.totalorder %s98, %s99
      %p110 = scmp.eq.s32.totalorder %s26, 0
      %p111 = por %p109, %p110
      %p112 = scmp.ne.s32.totalorder %s98, %s99
      %p113 = scmp.eq.s32.totalorder %s27, 3
      %p114 = por %p112, %p113
      %p116 = scmp.ne.s32.totalorder %s99, %s115
      %p117 = scmp.eq.s32.totalorder %s27, 0
      %p118 = por %p116, %p117
      %s119 = ssub.s32 %s29, %s36
      %p120 = scmp.eq.s32.totalorder %s119, 0
      %s122 = sadd.s32 %s121, 1
      %s123 = scalar_select %p120, %s121, %s122
      %p126 = pneg %p120
      %p127 = scmp.eq.s32.totalorder %s21, 3
      %p128 = por %p126, %p127
      %p129 = scmp.ne.s32.totalorder %s121, %s124
      %p130 = scmp.eq.s32.totalorder %s21, 0
      %p131 = por %p129, %p130
      %p132 = scmp.ne.s32.totalorder %s121, %s124
      %p133 = scmp.eq.s32.totalorder %s26, 3
      %p134 = por %p132, %p133
      %p135 = scmp.ne.s32.totalorder %s124, %s125
      %p136 = scmp.eq.s32.totalorder %s26, 0
      %p137 = por %p135, %p136
      %p138 = scmp.ne.s32.totalorder %s124, %s125
      %p139 = scmp.eq.s32.totalorder %s27, 3
      %p140 = por %p138, %p139
      %p142 = scmp.ne.s32.totalorder %s125, %s141
      %p143 = scmp.eq.s32.totalorder %s27, 0
      %p144 = por %p142, %p143
      %s145 = ssub.s32 %s29, %s36
      %p146 = scmp.eq.s32.totalorder %s145, 0
      %s148 = sadd.s32 %s147, 1
      %s149 = scalar_select %p146, %s147, %s148
      %p152 = pneg %p146
      %p153 = scmp.eq.s32.totalorder %s21, 3
      %p154 = por %p152, %p153
      %p155 = scmp.ne.s32.totalorder %s147, %s150
      %p156 = scmp.eq.s32.totalorder %s21, 0
      %p157 = por %p155, %p156
      %p158 = scmp.ne.s32.totalorder %s147, %s150
      %p159 = scmp.eq.s32.totalorder %s26, 3
      %p160 = por %p158, %p159
      %p161 = scmp.ne.s32.totalorder %s150, %s151
      %p162 = scmp.eq.s32.totalorder %s26, 0
      %p163 = por %p161, %p162
      %p164 = scmp.ne.s32.totalorder %s150, %s151
      %p165 = scmp.eq.s32.totalorder %s27, 3
      %p166 = por %p164, %p165
      %p168 = scmp.ne.s32.totalorder %s151, %s167
      %p169 = scmp.eq.s32.totalorder %s27, 0
      %p170 = por %p168, %p169
      %s171 = ssub.s32 %s29, %s36
      %p172 = scmp.eq.s32.totalorder %s171, 0
      %s174 = sadd.s32 %s173, 1
      %s175 = scalar_select %p172, %s173, %s174
      %p178 = pneg %p172
      %p179 = scmp.eq.s32.totalorder %s21, 3
      %p180 = por %p178, %p179
      %p181 = scmp.ne.s32.totalorder %s173, %s176
      %p182 = scmp.eq.s32.totalorder %s21, 0
      %p183 = por %p181, %p182
      %p184 = scmp.ne.s32.totalorder %s173, %s176
      %p185 = scmp.eq.s32.totalorder %s26, 3
      %p186 = por %p184, %p185
      %p187 = scmp.ne.s32.totalorder %s176, %s177
      %p188 = scmp.eq.s32.totalorder %s26, 0
      %p189 = por %p187, %p188
      %p190 = scmp.ne.s32.totalorder %s176, %s177
      %p191 = scmp.eq.s32.totalorder %s27, 3
      %p192 = por %p190, %p191
      %p194 = scmp.ne.s32.totalorder %s177, %s193
      %p195 = scmp.eq.s32.totalorder %s27, 0
      %p196 = por %p194, %p195
      %s197 = ssub.s32 %s29, %s36
      %p198 = scmp.eq.s32.totalorder %s197, 0
      %s200 = sadd.s32 %s199, 1
      %s201 = scalar_select %p198, %s199, %s200
      %p204 = pneg %p198
      %p205 = scmp.eq.s32.totalorder %s21, 3
      %p206 = por %p204, %p205
      %p207 = scmp.ne.s32.totalorder %s199, %s202
      %p208 = scmp.eq.s32.totalorder %s21, 0
      %p209 = por %p207, %p208
      %p210 = scmp.ne.s32.totalorder %s199, %s202
      %p211 = scmp.eq.s32.totalorder %s26, 3
      %p212 = por %p210, %p211
      %p213 = scmp.ne.s32.totalorder %s202, %s203
      %p214 = scmp.eq.s32.totalorder %s26, 0
      %p215 = por %p213, %p214
      %p216 = scmp.ne.s32.totalorder %s202, %s203
      %p217 = scmp.eq.s32.totalorder %s27, 3
      %p218 = por %p216, %p217
      %p220 = scmp.ne.s32.totalorder %s203, %s219
      %p221 = scmp.eq.s32.totalorder %s27, 0
      %p222 = por %p220, %p221
      %s223 = ssub.s32 %s29, %s36
      %p224 = scmp.eq.s32.totalorder %s223, 0
      %s226 = sadd.s32 %s225, 1
      %s227 = scalar_select %p224, %s225, %s226
      %p230 = pneg %p224
      %p231 = scmp.eq.s32.totalorder %s21, 3
      %p232 = por %p230, %p231
      %p233 = scmp.ne.s32.totalorder %s225, %s228
      %p234 = scmp.eq.s32.totalorder %s21, 0
      %p235 = por %p233, %p234
      %p236 = scmp.ne.s32.totalorder %s225, %s228
      %p237 = scmp.eq.s32.totalorder %s26, 3
      %p238 = por %p236, %p237
      %p239 = scmp.ne.s32.totalorder %s228, %s229
      %p240 = scmp.eq.s32.totalorder %s26, 0
      %p241 = por %p239, %p240
      %p242 = scmp.ne.s32.totalorder %s228, %s229
      %p243 = scmp.eq.s32.totalorder %s27, 3
      %p244 = por %p242, %p243
      %p246 = scmp.ne.s32.totalorder %s229, %s245
      %p247 = scmp.eq.s32.totalorder %s27, 0
      %p248 = por %p246, %p247
      %s249 = ssub.s32 %s29, %s36
      %p250 = scmp.eq.s32.totalorder %s249, 0
      %s252 = sadd.s32 %s251, 1
      %s253 = scalar_select %p250, %s251, %s252
      %p256 = pneg %p250
      %p257 = scmp.eq.s32.totalorder %s21, 3
      %p258 = por %p256, %p257
      %p259 = scmp.ne.s32.totalorder %s251, %s254
      %p260 = scmp.eq.s32.totalorder %s21, 0
      %p261 = por %p259, %p260
      %p262 = scmp.ne.s32.totalorder %s251, %s254
      %p263 = scmp.eq.s32.totalorder %s26, 3
      %p264 = por %p262, %p263
      %p265 = scmp.ne.s32.totalorder %s254, %s255
      %p266 = scmp.eq.s32.totalorder %s26, 0
      %p267 = por %p265, %p266
      %p268 = scmp.ne.s32.totalorder %s254, %s255
      %p269 = scmp.eq.s32.totalorder %s27, 3
      %p270 = por %p268, %p269
      %p272 = scmp.ne.s32.totalorder %s255, %s271
      %p273 = scmp.eq.s32.totalorder %s27, 0
      %p274 = por %p272, %p273
      %s275 = ssub.s32 %s29, %s36
      %p276 = scmp.eq.s32.totalorder %s275, 0
      %s278 = sadd.s32 %s277, 1
      %s279 = scalar_select %p276, %s277, %s278
      %p282 = pneg %p276
      %p283 = scmp.eq.s32.totalorder %s21, 3
      %p284 = por %p282, %p283
      %p285 = scmp.ne.s32.totalorder %s277, %s280
      %p286 = scmp.eq.s32.totalorder %s21, 0
      %p287 = por %p285, %p286
      %p288 = scmp.ne.s32.totalorder %s277, %s280
      %p289 = scmp.eq.s32.totalorder %s26, 3
      %p290 = por %p288, %p289
      %p291 = scmp.ne.s32.totalorder %s280, %s281
      %p292 = scmp.eq.s32.totalorder %s26, 0
      %p293 = por %p291, %p292
      %p294 = scmp.ne.s32.totalorder %s280, %s281
      %p295 = scmp.eq.s32.totalorder %s27, 3
      %p296 = por %p294, %p295
      %p298 = scmp.ne.s32.totalorder %s281, %s297
      %p299 = scmp.eq.s32.totalorder %s27, 0
      %p300 = por %p298, %p299
      %s302 = sadd.s32 %s301, 1
      %p305 = scmp.eq.s32.totalorder %s21, 3
      %p306 = scmp.ne.s32.totalorder %s301, %s303
      %p307 = scmp.eq.s32.totalorder %s21, 0
      %p308 = por %p306, %p307
      %p309 = scmp.ne.s32.totalorder %s301, %s303
      %p310 = scmp.eq.s32.totalorder %s26, 3
      %p311 = por %p309, %p310
      %p312 = scmp.ne.s32.totalorder %s303, %s304
      %p313 = scmp.eq.s32.totalorder %s26, 0
      %p314 = por %p312, %p313
      %p315 = scmp.ne.s32.totalorder %s303, %s304
      %p316 = scmp.eq.s32.totalorder %s27, 3
      %p317 = por %p315, %p316
      %p319 = scmp.ne.s32.totalorder %s304, %s318
      %p320 = scmp.eq.s32.totalorder %s27, 0
      %p321 = por %p319, %p320
      %s323 = sadd.s32 %s322, 1
      %p326 = scmp.eq.s32.totalorder %s21, 3
      %p327 = scmp.ne.s32.totalorder %s322, %s324
      %p328 = scmp.eq.s32.totalorder %s21, 0
      %p329 = por %p327, %p328
      %p330 = scmp.ne.s32.totalorder %s322, %s324
      %p331 = scmp.eq.s32.totalorder %s26, 3
      %p332 = por %p330, %p331
      %p333 = scmp.ne.s32.totalorder %s324, %s325
      %p334 = scmp.eq.s32.totalorder %s26, 0
      %p335 = por %p333, %p334
      %p336 = scmp.ne.s32.totalorder %s324, %s325
      %p337 = scmp.eq.s32.totalorder %s27, 3
      %p338 = por %p336, %p337
      %p340 = scmp.ne.s32.totalorder %s325, %s339
      %p341 = scmp.eq.s32.totalorder %s27, 0
      %p342 = por %p340, %p341
      %s343 = ssub.s32 %s28, %s40
      %p344 = scmp.eq.s32.totalorder %s343, 0
      %s346 = sadd.s32 %s345, 1
      %s347 = scalar_select %p344, %s345, %s346
      %p350 = pneg %p344
      %p351 = scmp.eq.s32.totalorder %s21, 3
      %p352 = por %p350, %p351
      %p353 = scmp.ne.s32.totalorder %s345, %s348
      %p354 = scmp.eq.s32.totalorder %s21, 0
      %p355 = por %p353, %p354
      %p356 = scmp.ne.s32.totalorder %s345, %s348
      %p357 = scmp.eq.s32.totalorder %s26, 3
      %p358 = por %p356, %p357
      %p359 = scmp.ne.s32.totalorder %s348, %s349
      %p360 = scmp.eq.s32.totalorder %s26, 0
      %p361 = por %p359, %p360
      %p362 = scmp.ne.s32.totalorder %s348, %s349
      %p363 = scmp.eq.s32.totalorder %s27, 3
      %p364 = por %p362, %p363
      %p366 = scmp.ne.s32.totalorder %s349, %s365
      %p367 = scmp.eq.s32.totalorder %s27, 0
      %p368 = por %p366, %p367
      %p369 = scmp.le.s32.totalorder 1, %s21
      %p370 = scmp.lt.s32.totalorder %s21, 5
      %p371 = pnand %p369, %p370
      %p372 = pneg %p371
      // Predicated region
      $region9: #{transformer_encoder.1} parent=5 // pred_check
        _
      $region10: #{transformer_encoder.1} parent=5 // pred_check_branch
        %374 = sbr.rel (%p371) target = $region12
      $region11: #{transformer_encoder.1} parent=5 // pred_region
        %s375 = ssub.s32 %s21, 1
        // Predicated region
        $region13: #{transformer_encoder.1} parent=11 // pred_check
          %p376 = pneg %p314
        $region14: #{transformer_encoder.1} parent=11 // pred_check_branch
          %378 = sbr.rel (%p376) target = $region16
        $region15: #{transformer_encoder.1} parent=11 // pred_region
          _
        $region16: #{transformer_encoder.1} parent=11 // pred_fallthru
          _
        // Predicated region
        $region17: #{transformer_encoder.1} parent=11 // pred_check
          %p379 = pneg %p335
        $region18: #{transformer_encoder.1} parent=11 // pred_check_branch
          %381 = sbr.rel (%p379) target = $region20
        $region19: #{transformer_encoder.1} parent=11 // pred_region
          _
        $region20: #{transformer_encoder.1} parent=11 // pred_fallthru
          _
      $region12: #{transformer_encoder.1} parent=5 // pred_fallthru
        _
      %p382 = scmp.lt.s32.totalorder %s21, 4
      // Predicated region
      $region21: #{transformer_encoder.1} parent=5 // pred_check
        %p383 = pneg %p382
      $region22: #{transformer_encoder.1} parent=5 // pred_check_branch
        %385 = sbr.rel (%p383) target = $region24
      $region23: #{transformer_encoder.1} parent=5 // pred_region
        // Predicated region
        $region25: #{transformer_encoder.1} parent=23 // pred_check
          %p386 = pneg %p53
        $region26: #{transformer_encoder.1} parent=23 // pred_check_branch
          %388 = sbr.rel (%p386) target = $region28
        $region27: #{transformer_encoder.1} parent=23 // pred_region
          %p389 = scmp.lt.s32.totalorder %s28, 1
          %s390 = scalar_select %p389, %s28, 1
          %s391 = smul.addr %s390, 8
          %s392 = scalar_lea.vmem %s0, %s391
        $region28: #{transformer_encoder.1} parent=23 // pred_fallthru
          _
        // Predicated region
        $region29: #{transformer_encoder.1} parent=23 // pred_check
          %p393 = pneg %p79
        $region30: #{transformer_encoder.1} parent=23 // pred_check_branch
          %395 = sbr.rel (%p393) target = $region32
        $region31: #{transformer_encoder.1} parent=23 // pred_region
          %p396 = scmp.lt.s32.totalorder %s29, 1
          %s397 = scalar_select %p396, %s29, 1
          %s398 = scalar_lea.vmem %s1, %s397
        $region32: #{transformer_encoder.1} parent=23 // pred_fallthru
          _
        // Predicated region
        $region33: #{transformer_encoder.1} parent=23 // pred_check
          %p399 = pneg %p105
        $region34: #{transformer_encoder.1} parent=23 // pred_check_branch
          %401 = sbr.rel (%p399) target = $region36
        $region35: #{transformer_encoder.1} parent=23 // pred_region
          %p402 = scmp.lt.s32.totalorder %s29, 1
          %s403 = scalar_select %p402, %s29, 1
          %s404 = scalar_lea.vmem %s2, %s403
        $region36: #{transformer_encoder.1} parent=23 // pred_fallthru
          _
        // Predicated region
        $region37: #{transformer_encoder.1} parent=23 // pred_check
          %p405 = pneg %p131
        $region38: #{transformer_encoder.1} parent=23 // pred_check_branch
          %407 = sbr.rel (%p405) target = $region40
        $region39: #{transformer_encoder.1} parent=23 // pred_region
          %p408 = scmp.lt.s32.totalorder %s29, 1
          %s409 = scalar_select %p408, %s29, 1
          %s410 = smul.addr %s409, 4
          %s411 = smul.addr %s410, 4
          %s412 = scalar_lea.vmem %s3, %s411
        $region40: #{transformer_encoder.1} parent=23 // pred_fallthru
          _
        // Predicated region
        $region41: #{transformer_encoder.1} parent=23 // pred_check
          %p413 = pneg %p157
        $region42: #{transformer_encoder.1} parent=23 // pred_check_branch
          %415 = sbr.rel (%p413) target = $region44
        $region43: #{transformer_encoder.1} parent=23 // pred_region
          %p416 = scmp.lt.s32.totalorder %s29, 1
          %s417 = scalar_select %p416, %s29, 1
          %s418 = scalar_lea.vmem %s4, %s417
        $region44: #{transformer_encoder.1} parent=23 // pred_fallthru
          _
        // Predicated region
        $region45: #{transformer_encoder.1} parent=23 // pred_check
          %p419 = pneg %p183
        $region46: #{transformer_encoder.1} parent=23 // pred_check_branch
          %421 = sbr.rel (%p419) target = $region48
        $region47: #{transformer_encoder.1} parent=23 // pred_region
          %p422 = scmp.lt.s32.totalorder %s29, 1
          %s423 = scalar_select %p422, %s29, 1
          %s424 = scalar_lea.vmem %s5, %s423
        $region48: #{transformer_encoder.1} parent=23 // pred_fallthru
          _
        // Predicated region
        $region49: #{transformer_encoder.1} parent=23 // pred_check
          %p425 = pneg %p209
        $region50: #{transformer_encoder.1} parent=23 // pred_check_branch
          %427 = sbr.rel (%p425) target = $region52
        $region51: #{transformer_encoder.1} parent=23 // pred_region
          %p428 = scmp.lt.s32.totalorder %s29, 1
          %s429 = scalar_select %p428, %s29, 1
          %s430 = smul.addr %s429, 4
          %s431 = smul.addr %s430, 4
          %s432 = scalar_lea.vmem %s6, %s431
        $region52: #{transformer_encoder.1} parent=23 // pred_fallthru
          _
        // Predicated region
        $region53: #{transformer_encoder.1} parent=23 // pred_check
          %p433 = pneg %p235
        $region54: #{transformer_encoder.1} parent=23 // pred_check_branch
          %435 = sbr.rel (%p433) target = $region56
        $region55: #{transformer_encoder.1} parent=23 // pred_region
          %p436 = scmp.lt.s32.totalorder %s29, 1
          %s437 = scalar_select %p436, %s29, 1
          %s438 = scalar_lea.vmem %s7, %s437
        $region56: #{transformer_encoder.1} parent=23 // pred_fallthru
          _
        // Predicated region
        $region57: #{transformer_encoder.1} parent=23 // pred_check
          %p439 = pneg %p261
        $region58: #{transformer_encoder.1} parent=23 // pred_check_branch
          %441 = sbr.rel (%p439) target = $region60
        $region59: #{transformer_encoder.1} parent=23 // pred_region
          %p442 = scmp.lt.s32.totalorder %s29, 1
          %s443 = scalar_select %p442, %s29, 1
          %s444 = smul.addr %s443, 8
          %s445 = smul.addr %s444, 4
          %s446 = scalar_lea.vmem %s8, %s445
        $region60: #{transformer_encoder.1} parent=23 // pred_fallthru
          _
        // Predicated region
        $region61: #{transformer_encoder.1} parent=23 // pred_check
          %p447 = pneg %p287
        $region62: #{transformer_encoder.1} parent=23 // pred_check_branch
          %449 = sbr.rel (%p447) target = $region64
        $region63: #{transformer_encoder.1} parent=23 // pred_region
          %p450 = scmp.lt.s32.totalorder %s29, 1
          %s451 = scalar_select %p450, %s29, 1
          %s452 = scalar_lea.vmem %s9, %s451
        $region64: #{transformer_encoder.1} parent=23 // pred_fallthru
          _
      $region24: #{transformer_encoder.1} parent=5 // pred_fallthru
        _
      %p453 = scmp.le.s32.totalorder 1, %s21
      %p454 = scmp.lt.s32.totalorder %s21, 5
      %p455 = pnand %p453, %p454
      %p456 = pneg %p455
      // Predicated region
      $region65: #{transformer_encoder.1} parent=5 // pred_check
        _
      $region66: #{transformer_encoder.1} parent=5 // pred_check_branch
        %458 = sbr.rel (%p455) target = $region68
      $region67: #{transformer_encoder.1} parent=5 // pred_region
        %s459 = ssub.s32 %s21, 1
        %p460 = scmp.lt.s32.totalorder %s30, 1
        %s461 = scalar_select %p460, %s30, 1
        %s462 = smul.addr %s461, 8
        %s463 = scalar_lea.vmem %s0, %s462
        %p464 = pneg %p59
        %p465 = pneg %p56
        %p466 = scmp.lt.s32.totalorder %s31, 1
        %s467 = scalar_select %p466, %s31, 1
        %s468 = scalar_lea.vmem %s1, %s467
        %p469 = pneg %p85
        %p470 = pneg %p82
        %p471 = scmp.lt.s32.totalorder %s31, 1
        %s472 = scalar_select %p471, %s31, 1
        %s473 = scalar_lea.vmem %s2, %s472
        %p474 = pneg %p111
        %p475 = pneg %p108
        %p476 = scmp.lt.s32.totalorder %s31, 1
        %s477 = scalar_select %p476, %s31, 1
        %s478 = smul.addr %s477, 4
        %s479 = smul.addr %s478, 4
        %s480 = scalar_lea.vmem %s3, %s479
        %p481 = pneg %p137
        %p482 = pneg %p134
        %p483 = scmp.lt.s32.totalorder %s31, 1
        %s484 = scalar_select %p483, %s31, 1
        %s485 = scalar_lea.vmem %s4, %s484
        %p486 = pneg %p163
        %p487 = pneg %p160
        %p488 = scmp.lt.s32.totalorder %s31, 1
        %s489 = scalar_select %p488, %s31, 1
        %s490 = scalar_lea.vmem %s5, %s489
        %p491 = pneg %p189
        %p492 = pneg %p186
        %p493 = scmp.lt.s32.totalorder %s31, 1
        %s494 = scalar_select %p493, %s31, 1
        %s495 = smul.addr %s494, 4
        %s496 = smul.addr %s495, 4
        %s497 = scalar_lea.vmem %s6, %s496
        %p498 = pneg %p215
        %p499 = pneg %p212
        %p500 = scmp.lt.s32.totalorder %s31, 1
        %s501 = scalar_select %p500, %s31, 1
        %s502 = scalar_lea.vmem %s7, %s501
        %p503 = pneg %p241
        %p504 = pneg %p238
        %p505 = scmp.lt.s32.totalorder %s31, 1
        %s506 = scalar_select %p505, %s31, 1
        %s507 = smul.addr %s506, 8
        %s508 = smul.addr %s507, 4
        %s509 = scalar_lea.vmem %s8, %s508
        %p510 = pneg %p267
        %p511 = pneg %p264
        %p512 = scmp.lt.s32.totalorder %s31, 1
        %s513 = scalar_select %p512, %s31, 1
        %s514 = scalar_lea.vmem %s9, %s513
        %p515 = pneg %p293
        %p516 = pneg %p290
        %p517 = pneg %p314
        %p518 = pneg %p311
        %p519 = pneg %p335
        %p520 = pneg %p332
        %p521 = pneg %p361
        %p522 = pneg %p358
        %s523 = sand.u32 %s348, 1
        %s524 = scalar_lea.sflag [#allocation6], %s523
        %s525 = sand.u32 %s348, 1
        %s526 = smul.addr %s525, 8
        %s527 = scalar_lea.vmem [#allocation5], %s526
        %p528 = scmp.lt.s32.totalorder %s30, 1
        %s529 = scalar_select %p528, %s30, 1
        %s530 = smul.addr %s529, 8
        %s531 = scalar_lea.vmem %s0, %s530
        %p532 = scmp.lt.s32.totalorder %s31, 1
        %s533 = scalar_select %p532, %s31, 1
        %s534 = scalar_lea.vmem %s1, %s533
        %p535 = scmp.lt.s32.totalorder %s31, 1
        %s536 = scalar_select %p535, %s31, 1
        %s537 = scalar_lea.vmem %s2, %s536
        %p538 = scmp.lt.s32.totalorder %s31, 1
        %s539 = scalar_select %p538, %s31, 1
        %s540 = smul.addr %s539, 4
        %s541 = smul.addr %s540, 4
        %s542 = scalar_lea.vmem %s3, %s541
        %p543 = scmp.lt.s32.totalorder %s31, 1
        %s544 = scalar_select %p543, %s31, 1
        %s545 = scalar_lea.vmem %s4, %s544
        %p546 = scmp.lt.s32.totalorder %s31, 1
        %s547 = scalar_select %p546, %s31, 1
        %s548 = scalar_lea.vmem %s5, %s547
        %p549 = scmp.lt.s32.totalorder %s31, 1
        %s550 = scalar_select %p549, %s31, 1
        %s551 = smul.addr %s550, 4
        %s552 = smul.addr %s551, 4
        %s553 = scalar_lea.vmem %s6, %s552
        %p554 = scmp.lt.s32.totalorder %s31, 1
        %s555 = scalar_select %p554, %s31, 1
        %s556 = scalar_lea.vmem %s7, %s555
        %p557 = scmp.lt.s32.totalorder %s31, 1
        %s558 = scalar_select %p557, %s31, 1
        %s559 = smul.addr %s558, 8
        %s560 = smul.addr %s559, 4
        %s561 = scalar_lea.vmem %s8, %s560
        %p562 = scmp.lt.s32.totalorder %s31, 1
        %s563 = scalar_select %p562, %s31, 1
        %s564 = scalar_lea.vmem %s9, %s563
        %p566 = scmp.eq.s32.totalorder %s31, 0
        // Predicated region
        $region69: #{transformer_encoder.1} parent=67 // pred_check
          %p567 = pneg %p566
        $region70: #{transformer_encoder.1} parent=67 // pred_check_branch
          %569 = sbr.rel (%p567) target = $region72
        $region71: #{transformer_encoder.1} parent=67 // pred_region
          %v570 = vld [vmem:[%s531] sm:$0xff]
          %vm571 = vcmask 261120
          %572 = vst.msk [vmem:[#allocation2] sm:$0xff] %vm571, %v570
        $region72: #{transformer_encoder.1} parent=67 // pred_fallthru
          _
        %v573 = vld [vmem:[#allocation2] sm:$0xff]
        %v574 = vld [vmem:[%s534] sm:$0x1]
        %v575 = vld [vmem:[%s537] sm:$0x1]
        %vm576 = vcmask 261120
        %v577 = vsel %vm576, %v573, 0.0
        %578 = vadd.xlane.f32.xlu0 %v577
        %v579 = vpop.xlane.xlu0 %578
        %v580 = vrcp.pop 32.0
        %v581 = vmul.f32 32.0, %v580
        %v582 = vsub.f32 1.0, %v581
        %v583 = vmul.f32 %v580, %v582
        %v584 = vadd.f32 %v580, %v583
        %vm585 = vweird.f32 %v580
        %v586 = vsel %vm585, %v580, %v584
        %v587 = vmul.f32 %v579, %v586
        %v588 = vsub.f32 %v573, %v587
        %v589 = vmul.f32 %v588, %v588
        %v590 = vsel %vm576, %v589, 0.0
        %591 = vadd.xlane.f32.xlu0 %v590
        %v592 = vpop.xlane.xlu0 %591
        %v593 = vmul.f32 %v592, %v586
        %v594 = vadd.f32 %v593, 1e-06
        %v595 = vrsqrt.pop %v594
        %v596 = vmul.f32 %v595, %v594
        %v597 = vmul.f32 %v596, %v595
        %v598 = vmul.f32 0.5, %v597
        %v599 = vsub.f32 1.5, %v598
        %v600 = vmul.f32 %v595, %v599
        %vm601 = vweird.f32 %v594
        %vm602 = vweird.f32 %v595
        %vm603 = vmor %vm601, %vm602
        %v604 = vsel %vm603, %v595, %v600
        %v605 = vmul.f32 %v588, %v604
        %v607 = vperm.slane %v574, 0
        %v609 = vmul.f32 %v605, %v607
        %v611 = vperm.slane %v575, 0
        %v613 = vadd.f32 %v609, %v611
        %v614 = vpack.c.bf16 %v613, %v613
        %v615 = vld [vmem:[%s542] sm:$0xf]
        %v616 = vld [vmem:[%s542 + $0x4] sm:$0xf]
        %v617 = vld [vmem:[%s542 + $0x8] sm:$0xf]
        %v618 = vld [vmem:[%s542 + $0xc] sm:$0xf]
        %v623 = vunpack.c.l.b16 %v615
        %v624 = vunpack.c.l.b16 %v616
        %v625 = vunpack.c.l.b16 %v617
        %v626 = vunpack.c.l.b16 %v618
        %v627 = vpack.c.b16 %v624, %v623
        %v628 = vpack.c.b16 %v626, %v625
        %v632 = vsel %vm576, %v614, 0
        %634 = vmatpush.bf16.msra.mxu0 0
        %635 = vmatpush.bf16.msra.mxu0 0
        %636 = vmatpush.bf16.msra.mxu0 0
        %637 = vmatpush.bf16.msra.mxu0 0
        %638 = vmatpush.bf16.msra.mxu0 0
        %639 = vmatpush.bf16.msra.mxu0 0
        %640 = vmatpush.bf16.msra.mxu0 %v628
        %641 = vmatpush.bf16.msra.mxu0 %v627
        %642 = vmatmul.bf16.gmra.mxu0 %v632
        %v643 = vpop.f32.mrf.mxu0
        %v644 = vadd.f32 0.0, %v643
        %v645 = vpop.f32.mrf.mxu0
        %646 = vdwg.mxu0
        %v647 = vpack.c.bf16 %v644, %v644
        %vm648 = vcmask 781312
        %649 = vst.msk [vmem:[#allocation3] sm:$0xf] %vm648, %v647
        %v650 = vld [vmem:[#allocation3] sm:$0xf]
        %v652 = vunpack.c.l.b16 %v650
        %v653 = vpack.c.b16 %v652, %v652
        %654 = vrot.lane.b32.xlu0 %v653, 96
        %v655 = vpop.permute.xlu0 %654
        %vm656 = vcmask 64512
        %v658 = vsel %vm656, %v650, 0
        %v661 = vsel %vm656, %v655, 0
        %663 = vmatpush.bf16.xpose.msra.mxu0 0
        %664 = vmatpush.bf16.xpose.msra.mxu0 0
        %665 = vmatpush.bf16.xpose.msra.mxu0 0
        %666 = vmatpush.bf16.xpose.msra.mxu0 0
        %667 = vmatpush.bf16.xpose.msra.mxu0 0
        %668 = vmatpush.bf16.xpose.msra.mxu0 0
        %669 = vmatpush.bf16.xpose.msra.mxu0 0
        %670 = vmatpush.bf16.xpose.msra.mxu0 %v661
        %671 = vmatmul.bf16.gmra.mxu0 %v658
        %v672 = vpop.f32.mrf.mxu0
        %v673 = vadd.f32 0.0, %v672
        %v674 = vpop.f32.mrf.mxu0
        %675 = vdwg.mxu0
        %v676 = vsel %vm656, %v673, -inf
        %677 = vmax.xlane.f32.xlu0 %v676
        %v678 = vpop.xlane.xlu0 %677
        %v679 = vsub.f32 %v673, %v678
        %v680 = vmul.f32 %v679, 1.442695
        %v681 = vpow.pop %v680
        %v682 = vsel %vm656, %v681, 0.0
        %683 = vadd.xlane.f32.xlu0 %v682
        %v684 = vpop.xlane.xlu0 %683
        %v685 = vrcp.pop %v684
        %v686 = vmul.f32 %v684, %v685
        %v687 = vsub.f32 1.0, %v686
        %v688 = vmul.f32 %v685, %v687
        %v689 = vadd.f32 %v685, %v688
        %vm690 = vweird.f32 %v684
        %vm691 = vweird.f32 %v685
        %vm692 = vmor %vm690, %vm691
        %v693 = vsel %vm692, %v685, %v689
        %v694 = vand.u32 2147483647, %v684
        %vm695 = vcmp.eq.f32.partialorder %v694, 8.507059e+37
        %v696 = vand.u32 %v684, 2147483648
        %v697 = vor.u32 1.1754944e-38, %v696
        %v698 = vsel %vm695, %v697, %v693
        %v699 = vmul.f32 1.0, %v698
        %v700 = vpack.c.bf16 %v681, %v681
        %701 = vrot.lane.b32.xlu0 %v653, 64
        %v702 = vpop.permute.xlu0 %701
        %v704 = vsel %vm656, %v700, 0
        %vm706 = vcmask 1043456
        %v708 = vsel %vm706, %v702, 0
        %710 = vmatpush.bf16.msra.mxu0 0
        %711 = vmatpush.bf16.msra.mxu0 0
        %712 = vmatpush.bf16.msra.mxu0 0
        %713 = vmatpush.bf16.msra.mxu0 0
        %714 = vmatpush.bf16.msra.mxu0 0
        %715 = vmatpush.bf16.msra.mxu0 0
        %716 = vmatpush.bf16.msra.mxu0 0
        %717 = vmatpush.bf16.msra.mxu0 %v708
        %718 = vmatmul.bf16.gmra.mxu0 %v704
        %v719 = vpop.f32.mrf.mxu0
        %v720 = vadd.f32 0.0, %v719
        %v721 = vpop.f32.mrf.mxu0
        %722 = vdwg.mxu0
        %v723 = vmul.f32 %v720, %v699
        %724 = vst.msk [vmem:[#allocation4] sm:$0xff] %vm656, %v723
        %v725 = vld [vmem:[#allocation3] sm:$0xf]
        %v727 = vunpack.c.l.b16 %v725
        %v728 = vpack.c.b16 %v727, %v727
        %729 = vrot.lane.b32.xlu0 %v728, 120
        %v730 = vpop.permute.xlu0 %729
        %731 = vrot.lane.b32.xlu0 %v728, 88
        %v732 = vpop.permute.xlu0 %731
        %v734 = vsel %vm656, %v730, 0
        %v737 = vsel %vm656, %v732, 0
        %739 = vmatpush.bf16.xpose.msra.mxu0 0
        %740 = vmatpush.bf16.xpose.msra.mxu0 0
        %741 = vmatpush.bf16.xpose.msra.mxu0 0
        %742 = vmatpush.bf16.xpose.msra.mxu0 0
        %743 = vmatpush.bf16.xpose.msra.mxu0 0
        %744 = vmatpush.bf16.xpose.msra.mxu0 0
        %745 = vmatpush.bf16.xpose.msra.mxu0 0
        %746 = vmatpush.bf16.xpose.msra.mxu0 %v737
        %747 = vmatmul.bf16.gmra.mxu0 %v734
        %v748 = vpop.f32.mrf.mxu0
        %v749 = vadd.f32 0.0, %v748
        %v750 = vpop.f32.mrf.mxu0
        %751 = vdwg.mxu0
        %v752 = vsel %vm656, %v749, -inf
        %753 = vmax.xlane.f32.xlu0 %v752
        %v754 = vpop.xlane.xlu0 %753
        %v755 = vsub.f32 %v749, %v754
        %v756 = vmul.f32 %v755, 1.442695
        %v757 = vpow.pop %v756
        %v758 = vsel %vm656, %v757, 0.0
        %759 = vadd.xlane.f32.xlu0 %v758
        %v760 = vpop.xlane.xlu0 %759
        %v761 = vrcp.pop %v760
        %v762 = vmul.f32 %v760, %v761
        %v763 = vsub.f32 1.0, %v762
        %v764 = vmul.f32 %v761, %v763
        %v765 = vadd.f32 %v761, %v764
        %vm766 = vweird.f32 %v760
        %vm767 = vweird.f32 %v761
        %vm768 = vmor %vm766, %vm767
        %v769 = vsel %vm768, %v761, %v765
        %v770 = vand.u32 2147483647, %v760
        %vm771 = vcmp.eq.f32.partialorder %v770, 8.507059e+37
        %v772 = vand.u32 %v760, 2147483648
        %v773 = vor.u32 1.1754944e-38, %v772
        %v774 = vsel %vm771, %v773, %v769
        %v775 = vmul.f32 1.0, %v774
        %v776 = vpack.c.bf16 %v757, %v757
        %777 = vrot.lane.b32.xlu0 %v728, 56
        %v778 = vpop.permute.xlu0 %777
        %v780 = vsel %vm656, %v776, 0
        %v783 = vsel %vm706, %v778, 0
        %785 = vmatpush.bf16.msra.mxu0 0
        %786 = vmatpush.bf16.msra.mxu0 0
        %787 = vmatpush.bf16.msra.mxu0 0
        %788 = vmatpush.bf16.msra.mxu0 0
        %789 = vmatpush.bf16.msra.mxu0 0
        %790 = vmatpush.bf16.msra.mxu0 0
        %791 = vmatpush.bf16.msra.mxu0 0
        %792 = vmatpush.bf16.msra.mxu0 %v783
        %793 = vmatmul.bf16.gmra.mxu0 %v780
        %v794 = vpop.f32.mrf.mxu0
        %v795 = vadd.f32 0.0, %v794
        %v796 = vpop.f32.mrf.mxu0
        %797 = vdwg.mxu0
        %v798 = vmul.f32 %v795, %v775
        %800 = vrot.lane.b32.xlu0 %v798, 8
        %v801 = vpop.permute.xlu0 %800
        %vm803 = vcmask 130112
        %804 = vst.msk [vmem:[#allocation4] sm:$0xff] %vm803, %v801
        %v805 = vld [vmem:[#allocation3] sm:$0xf]
        %v807 = vunpack.c.l.b16 %v805
        %v808 = vpack.c.b16 %v807, %v807
        %809 = vrot.lane.b32.xlu0 %v808, 112
        %v810 = vpop.permute.xlu0 %809
        %811 = vrot.lane.b32.xlu0 %v808, 80
        %v812 = vpop.permute.xlu0 %811
        %v814 = vsel %vm656, %v810, 0
        %v817 = vsel %vm656, %v812, 0
        %819 = vmatpush.bf16.xpose.msra.mxu0 0
        %820 = vmatpush.bf16.xpose.msra.mxu0 0
        %821 = vmatpush.bf16.xpose.msra.mxu0 0
        %822 = vmatpush.bf16.xpose.msra.mxu0 0
        %823 = vmatpush.bf16.xpose.msra.mxu0 0
        %824 = vmatpush.bf16.xpose.msra.mxu0 0
        %825 = vmatpush.bf16.xpose.msra.mxu0 0
        %826 = vmatpush.bf16.xpose.msra.mxu0 %v817
        %827 = vmatmul.bf16.gmra.mxu0 %v814
        %v828 = vpop.f32.mrf.mxu0
        %v829 = vadd.f32 0.0, %v828
        %v830 = vpop.f32.mrf.mxu0
        %831 = vdwg.mxu0
        %v832 = vsel %vm656, %v829, -inf
        %833 = vmax.xlane.f32.xlu0 %v832
        %v834 = vpop.xlane.xlu0 %833
        %v835 = vsub.f32 %v829, %v834
        %v836 = vmul.f32 %v835, 1.442695
        %v837 = vpow.pop %v836
        %v838 = vsel %vm656, %v837, 0.0
        %839 = vadd.xlane.f32.xlu0 %v838
        %v840 = vpop.xlane.xlu0 %839
        %v841 = vrcp.pop %v840
        %v842 = vmul.f32 %v840, %v841
        %v843 = vsub.f32 1.0, %v842
        %v844 = vmul.f32 %v841, %v843
        %v845 = vadd.f32 %v841, %v844
        %vm846 = vweird.f32 %v840
        %vm847 = vweird.f32 %v841
        %vm848 = vmor %vm846, %vm847
        %v849 = vsel %vm848, %v841, %v845
        %v850 = vand.u32 2147483647, %v840
        %vm851 = vcmp.eq.f32.partialorder %v850, 8.507059e+37
        %v852 = vand.u32 %v840, 2147483648
        %v853 = vor.u32 1.1754944e-38, %v852
        %v854 = vsel %vm851, %v853, %v849
        %v855 = vmul.f32 1.0, %v854
        %v856 = vpack.c.bf16 %v837, %v837
        %857 = vrot.lane.b32.xlu0 %v808, 48
        %v858 = vpop.permute.xlu0 %857
        %v860 = vsel %vm656, %v856, 0
        %v863 = vsel %vm706, %v858, 0
        %865 = vmatpush.bf16.msra.mxu0 0
        %866 = vmatpush.bf16.msra.mxu0 0
        %867 = vmatpush.bf16.msra.mxu0 0
        %868 = vmatpush.bf16.msra.mxu0 0
        %869 = vmatpush.bf16.msra.mxu0 0
        %870 = vmatpush.bf16.msra.mxu0 0
        %871 = vmatpush.bf16.msra.mxu0 0
        %872 = vmatpush.bf16.msra.mxu0 %v863
        %873 = vmatmul.bf16.gmra.mxu0 %v860
        %v874 = vpop.f32.mrf.mxu0
        %v875 = vadd.f32 0.0, %v874
        %v876 = vpop.f32.mrf.mxu0
        %877 = vdwg.mxu0
        %v878 = vmul.f32 %v875, %v855
        %880 = vrot.lane.b32.xlu0 %v878, 16
        %v881 = vpop.permute.xlu0 %880
        %vm883 = vcmask 195712
        %884 = vst.msk [vmem:[#allocation4] sm:$0xff] %vm883, %v881
        %v885 = vld [vmem:[#allocation3] sm:$0xf]
        %v887 = vunpack.c.l.b16 %v885
        %v888 = vpack.c.b16 %v887, %v887
        %889 = vrot.lane.b32.xlu0 %v888, 104
        %v890 = vpop.permute.xlu0 %889
        %891 = vrot.lane.b32.xlu0 %v888, 72
        %v892 = vpop.permute.xlu0 %891
        %v894 = vsel %vm656, %v890, 0
        %v897 = vsel %vm656, %v892, 0
        %899 = vmatpush.bf16.xpose.msra.mxu0 0
        %900 = vmatpush.bf16.xpose.msra.mxu0 0
        %901 = vmatpush.bf16.xpose.msra.mxu0 0
        %902 = vmatpush.bf16.xpose.msra.mxu0 0
        %903 = vmatpush.bf16.xpose.msra.mxu0 0
        %904 = vmatpush.bf16.xpose.msra.mxu0 0
        %905 = vmatpush.bf16.xpose.msra.mxu0 0
        %906 = vmatpush.bf16.xpose.msra.mxu0 %v897
        %907 = vmatmul.bf16.gmra.mxu0 %v894
        %v908 = vpop.f32.mrf.mxu0
        %v909 = vadd.f32 0.0, %v908
        %v910 = vpop.f32.mrf.mxu0
        %911 = vdwg.mxu0
        %v912 = vsel %vm656, %v909, -inf
        %913 = vmax.xlane.f32.xlu0 %v912
        %v914 = vpop.xlane.xlu0 %913
        %v915 = vsub.f32 %v909, %v914
        %v916 = vmul.f32 %v915, 1.442695
        %v917 = vpow.pop %v916
        %v918 = vsel %vm656, %v917, 0.0
        %919 = vadd.xlane.f32.xlu0 %v918
        %v920 = vpop.xlane.xlu0 %919
        %v921 = vrcp.pop %v920
        %v922 = vmul.f32 %v920, %v921
        %v923 = vsub.f32 1.0, %v922
        %v924 = vmul.f32 %v921, %v923
        %v925 = vadd.f32 %v921, %v924
        %vm926 = vweird.f32 %v920
        %vm927 = vweird.f32 %v921
        %vm928 = vmor %vm926, %vm927
        %v929 = vsel %vm928, %v921, %v925
        %v930 = vand.u32 2147483647, %v920
        %vm931 = vcmp.eq.f32.partialorder %v930, 8.507059e+37
        %v932 = vand.u32 %v920, 2147483648
        %v933 = vor.u32 1.1754944e-38, %v932
        %v934 = vsel %vm931, %v933, %v929
        %v935 = vmul.f32 1.0, %v934
        %v936 = vpack.c.bf16 %v917, %v917
        %937 = vrot.lane.b32.xlu0 %v888, 40
        %v938 = vpop.permute.xlu0 %937
        %v940 = vsel %vm656, %v936, 0
        %v943 = vsel %vm706, %v938, 0
        %945 = vmatpush.bf16.msra.mxu0 0
        %946 = vmatpush.bf16.msra.mxu0 0
        %947 = vmatpush.bf16.msra.mxu0 0
        %948 = vmatpush.bf16.msra.mxu0 0
        %949 = vmatpush.bf16.msra.mxu0 0
        %950 = vmatpush.bf16.msra.mxu0 0
        %951 = vmatpush.bf16.msra.mxu0 0
        %952 = vmatpush.bf16.msra.mxu0 %v943
        %953 = vmatmul.bf16.gmra.mxu0 %v940
        %v954 = vpop.f32.mrf.mxu0
        %v955 = vadd.f32 0.0, %v954
        %v956 = vpop.f32.mrf.mxu0
        %957 = vdwg.mxu0
        %v958 = vmul.f32 %v955, %v935
        %960 = vrot.lane.b32.xlu0 %v958, 24
        %v961 = vpop.permute.xlu0 %960
        %vm963 = vcmask 261312
        %964 = vst.msk [vmem:[#allocation4] sm:$0xff] %vm963, %v961
        %v965 = vld [vmem:[#allocation4] sm:$0xff]
        %v966 = vadd.f32 %v573, %v965
        %v967 = vld [vmem:[%s545] sm:$0x1]
        %v968 = vld [vmem:[%s548] sm:$0x1]
        %v969 = vsel %vm576, %v966, 0.0
        %970 = vadd.xlane.f32.xlu0 %v969
        %v971 = vpop.xlane.xlu0 %970
        %v972 = vmul.f32 %v971, %v586
        %v973 = vsub.f32 %v966, %v972
        %v974 = vmul.f32 %v973, %v973
        %v975 = vsel %vm576, %v974, 0.0
        %976 = vadd.xlane.f32.xlu0 %v975
        %v977 = vpop.xlane.xlu0 %976
        %v978 = vmul.f32 %v977, %v586
        %v979 = vadd.f32 %v978, 1e-06
        %v980 = vrsqrt.pop %v979
        %v981 = vmul.f32 %v980, %v979
        %v982 = vmul.f32 %v981, %v980
        %v983 = vmul.f32 0.5, %v982
        %v984 = vsub.f32 1.5, %v983
        %v985 = vmul.f32 %v980, %v984
        %vm986 = vweird.f32 %v979
        %vm987 = vweird.f32 %v980
        %vm988 = vmor %vm986, %vm987
        %v989 = vsel %vm988, %v980, %v985
        %v990 = vmul.f32 %v973, %v989
        %v992 = vperm.slane %v967, 0
        %v994 = vmul.f32 %v990, %v992
        %v996 = vperm.slane %v968, 0
        %v998 = vadd.f32 %v994, %v996
        %v999 = vpack.c.bf16 %v998, %v998
        %v1000 = vld [vmem:[%s553] sm:$0xf]
        %v1001 = vld [vmem:[%s553 + $0x4] sm:$0xf]
        %v1002 = vld [vmem:[%s553 + $0x8] sm:$0xf]
        %v1003 = vld [vmem:[%s553 + $0xc] sm:$0xf]
        %v1004 = vld [vmem:[%s556] sm:$0x1]
        %v1006 = vperm.slane %v1004, 0
        %v1012 = vunpack.c.l.b16 %v1000
        %v1013 = vunpack.c.l.b16 %v1001
        %v1014 = vunpack.c.l.b16 %v1002
        %v1015 = vunpack.c.l.b16 %v1003
        %v1016 = vpack.c.b16 %v1013, %v1012
        %v1017 = vpack.c.b16 %v1015, %v1014
        %v1021 = vsel %vm576, %v999, 0
        %1023 = vmatpush.bf16.msra.mxu0 0
        %1024 = vmatpush.bf16.msra.mxu0 0
        %1025 = vmatpush.bf16.msra.mxu0 0
        %1026 = vmatpush.bf16.msra.mxu0 0
        %1027 = vmatpush.bf16.msra.mxu0 0
        %1028 = vmatpush.bf16.msra.mxu0 0
        %1029 = vmatpush.bf16.msra.mxu0 %v1017
        %1030 = vmatpush.bf16.msra.mxu0 %v1016
        %1031 = vmatmul.bf16.gmra.mxu0 %v1021
        %v1032 = vpop.f32.mrf.mxu0
        %v1033 = vadd.f32 %v1006, %v1032
        %v1034 = vpop.f32.mrf.mxu0
        %1035 = vdwg.mxu0
        %v1036 = vmul.f32 %v1033, 0.5
        %v1037 = vmul.f32 %v1033, 0.70710677
        %v1038 = vmul.f32 %v1037, %v1037
        %v1039 = vmin.f32 16.0, %v1038
        %v1040 = vmul.f32 %v1039, 2.1237322e-06
        %v1041 = vadd.f32 %v1040, 0.00028619796
        %v1042 = vmul.f32 %v1039, %v1041
        %v1043 = vadd.f32 %v1042, 0.0036580483
        %v1044 = vmul.f32 %v1039, %v1043
        %v1045 = vadd.f32 %v1044, 0.05243302
        %v1046 = vmul.f32 %v1039, %v1045
        %v1047 = vadd.f32 %v1046, 0.18741608
        %v1048 = vmul.f32 %v1039, %v1047
        %v1049 = vadd.f32 %v1048, 1.1283791
        %v1050 = vmul.f32 %v1037, %v1049
        %v1051 = vmul.f32 %v1039, 3.8918573e-05
        %v1052 = vadd.f32 %v1051, 0.001143296
        %v1053 = vmul.f32 %v1039, %v1052
        %v1054 = vadd.f32 %v1053, 0.014752088
        %v1055 = vmul.f32 %v1039, %v1054
        %v1056 = vadd.f32 %v1055, 0.112945676
        %v1057 = vmul.f32 %v1039, %v1056
        %v1058 = vadd.f32 %v1057, 0.4994258
        %v1059 = vmul.f32 %v1039, %v1058
        %v1060 = vadd.f32 %v1059, 1.0
        %v1061 = vrcp.pop %v1060
        %v1062 = vmul.f32 %v1060, %v1061
        %v1063 = vsub.f32 1.0, %v1062
        %v1064 = vmul.f32 %v1061, %v1063
        %v1065 = vadd.f32 %v1061, %v1064
        %vm1066 = vweird.f32 %v1060
        %vm1067 = vweird.f32 %v1061
        %vm1068 = vmor %vm1066, %vm1067
        %v1069 = vsel %vm1068, %v1061, %v1065
        %v1070 = vand.u32 2147483647, %v1060
        %vm1071 = vcmp.eq.f32.partialorder %v1070, 8.507059e+37
        %v1072 = vand.u32 %v1060, 2147483648
        %v1073 = vor.u32 1.1754944e-38, %v1072
        %v1074 = vsel %vm1071, %v1073, %v1069
        %v1075 = vmul.f32 %v1050, %v1074
        %v1076 = vmin.f32 %v1075, 1.0
        %v1077 = vmax.f32 %v1076, -1.0
        %v1078 = vadd.f32 %v1077, 1.0
        %v1079 = vmul.f32 %v1036, %v1078
        %v1080 = vpack.c.bf16 %v1079, %v1079
        %v1081 = vld [vmem:[%s561] sm:$0xf]
        %v1082 = vld [vmem:[%s561 + $0x4] sm:$0xf]
        %v1083 = vld [vmem:[%s561 + $0x8] sm:$0xf]
        %v1084 = vld [vmem:[%s561 + $0xc] sm:$0xf]
        %v1085 = vld [vmem:[%s561 + $0x10] sm:$0xf]
        %v1086 = vld [vmem:[%s561 + $0x14] sm:$0xf]
        %v1087 = vld [vmem:[%s561 + $0x18] sm:$0xf]
        %v1088 = vld [vmem:[%s561 + $0x1c] sm:$0xf]
        %v1089 = vld [vmem:[%s564] sm:$0x1]
        %v1091 = vperm.slane %v1089, 0
        %v1101 = vunpack.c.l.b16 %v1081
        %v1102 = vunpack.c.l.b16 %v1082
        %v1103 = vunpack.c.l.b16 %v1083
        %v1104 = vunpack.c.l.b16 %v1084
        %v1105 = vunpack.c.l.b16 %v1085
        %v1106 = vunpack.c.l.b16 %v1086
        %v1107 = vunpack.c.l.b16 %v1087
        %v1108 = vunpack.c.l.b16 %v1088
        %v1109 = vpack.c.b16 %v1102, %v1101
        %v1110 = vpack.c.b16 %v1104, %v1103
        %v1111 = vpack.c.b16 %v1106, %v1105
        %v1112 = vpack.c.b16 %v1108, %v1107
        %vm1117 = vcmask 523264
        %v1119 = vsel %vm1117, %v1080, 0
        %1121 = vmatpush.bf16.msra.mxu0 0
        %1122 = vmatpush.bf16.msra.mxu0 0
        %1123 = vmatpush.bf16.msra.mxu0 0
        %1124 = vmatpush.bf16.msra.mxu0 0
        %1125 = vmatpush.bf16.msra.mxu0 %v1112
        %1126 = vmatpush.bf16.msra.mxu0 %v1111
        %1127 = vmatpush.bf16.msra.mxu0 %v1110
        %1128 = vmatpush.bf16.msra.mxu0 %v1109
        %1129 = vmatmul.bf16.gmra.mxu0 %v1119
        %v1130 = vpop.f32.mrf.mxu0
        %v1131 = vadd.f32 %v1091, %v1130
        %v1132 = vpop.f32.mrf.mxu0
        %1133 = vdwg.mxu0
        %v1134 = vadd.f32 %v966, %v1131
        %1135 = vst.msk [vmem:[#allocation2] sm:$0xff] %vm576, %v1134
        %p1136 = scmp.eq.s32.totalorder %s31, 1
        // Predicated region
        $region73: #{transformer_encoder.1} parent=67 // pred_check
          %p1137 = pneg %p1136
        $region74: #{transformer_encoder.1} parent=67 // pred_check_branch
          %1139 = sbr.rel (%p1137) target = $region76
        $region75: #{transformer_encoder.1} parent=67 // pred_region
          %v1140 = vld [vmem:[%s10] sm:$0x1]
          %v1141 = vld [vmem:[%s11] sm:$0x1]
          %v1142 = vsel %vm576, %v1134, 0.0
          %1143 = vadd.xlane.f32.xlu0 %v1142
          %v1144 = vpop.xlane.xlu0 %1143
          %v1145 = vmul.f32 %v1144, %v586
          %v1146 = vsub.f32 %v1134, %v1145
          %v1147 = vmul.f32 %v1146, %v1146
          %v1148 = vsel %vm576, %v1147, 0.0
          %1149 = vadd.xlane.f32.xlu0 %v1148
          %v1150 = vpop.xlane.xlu0 %1149
          %v1151 = vmul.f32 %v1150, %v586
          %v1152 = vadd.f32 %v1151, 1e-06
          %v1153 = vrsqrt.pop %v1152
          %v1154 = vmul.f32 %v1153, %v1152
          %v1155 = vmul.f32 %v1154, %v1153
          %v1156 = vmul.f32 0.5, %v1155
          %v1157 = vsub.f32 1.5, %v1156
          %v1158 = vmul.f32 %v1153, %v1157
          %vm1159 = vweird.f32 %v1152
          %vm1160 = vweird.f32 %v1153
          %vm1161 = vmor %vm1159, %vm1160
          %v1162 = vsel %vm1161, %v1153, %v1158
          %v1163 = vmul.f32 %v1146, %v1162
          %v1165 = vperm.slane %v1140, 0
          %v1167 = vmul.f32 %v1163, %v1165
          %v1169 = vperm.slane %v1141, 0
          %v1171 = vadd.f32 %v1167, %v1169
          %1172 = vst.msk [vmem:[%s527] sm:$0xff] %vm576, %v1171
        $region76: #{transformer_encoder.1} parent=67 // pred_fallthru
          _
        %s1173 = sand.u32 %s348, 1
        %s1174 = scalar_lea.sflag [#allocation6], %s1173
        %s1175 = sand.u32 %s348, 1
        %s1176 = smul.addr %s1175, 8
        %s1177 = scalar_lea.vmem [#allocation5], %s1176
        // Predicated region
        $region77: #{transformer_encoder.1} parent=67 // pred_check
          %p1178 = pneg %p358
        $region78: #{transformer_encoder.1} parent=67 // pred_check_branch
          %1180 = sbr.rel (%p1178) target = $region80
        $region79: #{transformer_encoder.1} parent=67 // pred_region
          %1182 = vsyncadd %s1174, 0
          %s1183 = smul.addr %s30, 8
          %s1184 = scalar_lea.hbm %s12, %s1183
          %s1186 = sshll.u32 %s1177, 4
          %s1187 = int_to_ptr.vmem [resolvable:$true] %s1186
          %s1188 = sshll.u32 %s1184, 4
          %s1189 = int_to_ptr.hbm [resolvable:$true] %s1188
          %1191 = dma.vmem_to_hbm [thread:$0]  %s1187, 128, %s1189, %s1174
        $region80: #{transformer_encoder.1} parent=67 // pred_fallthru
          _
      $region68: #{transformer_encoder.1} parent=5 // pred_fallthru
        _
      %p1192 = scmp.le.s32.totalorder 2, %s21
      // Predicated region
      $region81: #{transformer_encoder.1} parent=5 // pred_check
        %p1193 = pneg %p1192
      $region82: #{transformer_encoder.1} parent=5 // pred_check_branch
        %1195 = sbr.rel (%p1193) target = $region84
      $region83: #{transformer_encoder.1} parent=5 // pred_region
        %s1196 = ssub.s32 %s21, 2
        // Predicated region
        $region85: #{transformer_encoder.1} parent=83 // pred_check
          %p1197 = pneg %p364
        $region86: #{transformer_encoder.1} parent=83 // pred_check_branch
          %1199 = sbr.rel (%p1197) target = $region88
        $region87: #{transformer_encoder.1} parent=83 // pred_region
          %s1200 = sand.u32 %s349, 1
          %s1201 = scalar_lea.sflag [#allocation6], %s1200
          %s1202 = sand.u32 %s349, 1
          %s1203 = smul.addr %s1202, 8
          %s1204 = scalar_lea.vmem [#allocation5], %s1203
          %1206 = dma.done %s1201, 128
        $region88: #{transformer_encoder.1} parent=83 // pred_fallthru
          _
      $region84: #{transformer_encoder.1} parent=5 // pred_fallthru
        _
    $region6: #{transformer_encoder.1} parent=1 // loop_footer
      %s25 = sadd.s32 1, %s21
    $region7: #{transformer_encoder.1} parent=1 // loop_footer_branch
      %20 = sbr.rel target = $region3
    $region8: #{transformer_encoder.1} parent=1 // loop_exit
      _
    %1207 = vsyncpa [#allocation6], 1
    %s1208 = scalar_lea.sflag [#allocation6], 1
    %1209 = vsyncpa %s1208, 1

</llo_original>
